<compile_context>
chip_gen: v7x
topology: tpu7x:2x2x1
jax: 0.10.0
libtpu: 0.0.40
codegen_flags: <defaults>
</compile_context>

<pallas_src>
import functools
import numpy as np
import jax
import jax.numpy as jnp
from jax import lax
from jax.experimental import pallas as pl
from jax.experimental.pallas import tpu as pltpu


def rnn_maxpool_kernel(l_max_ref,                       # SMEM (1,) int32
                       emb_ref, lens_ref, mx0_ref,
                       w_ih0_ref, b0_ref, w_hh0_ref,
                       w_ih1_ref, w_hh1_ref, b1_ref,
                       w_fc_ref, b_fc_ref,
                       out_ref,
                       xp_ref, h0_ref, h1_ref, mx_ref,
                       *, chunk):
    S, TB, H = xp_ref.shape
    E = emb_ref.shape[-1]
    NEG = jnp.float32(-1e30)

    # ---- hoisted layer-0 input projection: ONE (S*TB, E) x (E, H) matmul ----
    # (b_ih0 + b_hh0 already folded into b0 by the wrapper).  TB % 8 == 0 is
    # guaranteed by the wrapper, so both reshapes are tile-aligned no-ops.
    emb2 = emb_ref[...].reshape(S * TB, E)
    proj = jnp.dot(emb2, w_ih0_ref[...],
                   preferred_element_type=jnp.float32) + b0_ref[...]
    xp_ref[...] = proj.reshape(S, TB, H)

    # invariants hoisted out of the recurrence
    lens = lens_ref[...]                                 # (TB, 1) int32
    w_hh0 = w_hh0_ref[...]
    w_ih1 = w_ih1_ref[...]
    w_hh1 = w_hh1_ref[...]
    b1 = jnp.broadcast_to(b1_ref[...], (TB, H))          # broadcast once

    # state in VMEM scratch so the dynamic-bound chunk loop carries no vregs
    h0_ref[...] = jnp.zeros((TB, H), jnp.float32)
    h1_ref[...] = jnp.zeros((TB, H), jnp.float32)
    # rows with lens[b] < max(lens) see a zero-filled candidate in the max
    # (pad_packed_sequence zero-fill); rows without padding start at -1e30.
    mx_ref[...] = jnp.broadcast_to(mx0_ref[...], (TB, H))

    # only run ceil(l_max / chunk) chunks: timesteps beyond l_max are dead work
    n_chunks = pl.cdiv(l_max_ref[0], chunk)

    @pl.loop(0, n_chunks)
    def _(c):
        h0 = h0_ref[...]
        h1 = h1_ref[...]
        mx = mx_ref[...]
        base = pl.multiple_of(c * chunk, chunk)
        for j in range(chunk):                           # static bounded unroll
            t = base + j
            x_t = xp_ref[t]                              # (TB, H), leading-axis index
            # layer-1 recurrent term depends only on the previous step's h1,
            # so it overlaps with layer-0's matmul + tanh (off the serial path)
            hp1 = jnp.dot(h1, w_hh1, preferred_element_type=jnp.float32) + b1
            h0 = jnp.tanh(x_t + jnp.dot(h0, w_hh0,
                                        preferred_element_type=jnp.float32))
            h1 = jnp.tanh(jnp.dot(h0, w_ih1,
                                  preferred_element_type=jnp.float32) + hp1)
            # additive validity mask from the (TB,1) lens vreg (no scratch)
            mask = jnp.where(t < lens, jnp.float32(0.0), NEG)   # (TB, 1)
            mx = jnp.maximum(mx, h1 + mask)
        h0_ref[...] = h0
        h1_ref[...] = h1
        mx_ref[...] = mx

    # ---- FC + sigmoid -------------------------------------------------------
    pooled = mx_ref[...]
    w_fc = w_fc_ref[...]
    if w_fc.shape[0] == 1:
        # degenerate (TB,H)x(H,1): VPU multiply + lane reduction, no MXU trip
        logits = jnp.sum(pooled * w_fc, axis=-1, keepdims=True)
    else:
        logits = lax.dot_general(pooled, w_fc, (((1,), (1,)), ((), ())),
                                 preferred_element_type=jnp.float32)
    out_ref[...] = jax.nn.sigmoid(logits + b_fc_ref[...]).astype(out_ref.dtype)


def text_classifier_forward(x_ids, lengths, params, *, batch_block=None):
    """x_ids: (B, S) int32 token ids; lengths: (B,) int32 valid lengths."""
    B, S = x_ids.shape
    E = params["emb_table"].shape[1]
    H = params["w_hh0"].shape[0]
    O = params["w_fc"].shape[0]

    # pad batch to a sublane multiple so every tile / reshape is 8-aligned
    B_pad = max(8, -(-B // 8) * 8)
    pad = B_pad - B
    x_ids_p = jnp.pad(x_ids, ((0, pad), (0, 0)))
    lens_p = jnp.pad(lengths.astype(jnp.int32), (0, pad))

    # gather time-major directly (transpose the ids, not the activations)
    # TODO(synk): when vocab < S*B, pre-projecting the table (vocab,E)x(E,H) in
    # the wrapper and gathering xp directly would remove the in-kernel matmul.
    emb_t = jnp.take(params["emb_table"], x_ids_p.T, axis=0).astype(jnp.float32)

    lens2 = lens_p.reshape(B_pad, 1)
    l_max = jnp.max(lengths).astype(jnp.int32)
    mx0 = jnp.where(lens2 < l_max, jnp.float32(0.0), jnp.float32(-1e30))
    l_max_arr = l_max.reshape(1)

    # pre-transposed weights (x @ W layout); biases fused / reshaped once
    w_ih0 = params["w_ih0"].T.astype(jnp.float32)                 # (E, H)
    b0 = (params["b_ih0"] + params["b_hh0"]).reshape(1, H).astype(jnp.float32)
    w_hh0 = params["w_hh0"].T.astype(jnp.float32)                 # (H, H)
    w_ih1 = params["w_ih1"].T.astype(jnp.float32)                 # (H, H)
    w_hh1 = params["w_hh1"].T.astype(jnp.float32)                 # (H, H)
    b1 = (params["b_ih1"] + params["b_hh1"]).reshape(1, H).astype(jnp.float32)
    w_fc = params["w_fc"].astype(jnp.float32)                     # (O, H)
    b_fc = params["b_fc"].reshape(1, O).astype(jnp.float32)

    # batch grid: TB == B_pad here (grid=(1,)); on v7x pass batch_block=B_pad//2
    # (multiple of 8) to shard the parallel axis across both TensorCores.
    TB = B_pad if batch_block is None else batch_block
    assert B_pad % TB == 0 and TB % 8 == 0

    # static recurrence chunk: small bounded unroll inside the dynamic l_max loop
    chunk = next(c for c in (8, 4, 2, 1) if S % c == 0)

    grid_spec = pltpu.PrefetchScalarGridSpec(
        num_scalar_prefetch=1,
        grid=(B_pad // TB,),
        in_specs=[
            pl.BlockSpec((S, TB, E), lambda i, *_: (0, i, 0)),    # emb (time-major)
            pl.BlockSpec((TB, 1),    lambda i, *_: (i, 0)),       # lens
            pl.BlockSpec((TB, 1),    lambda i, *_: (i, 0)),       # max-pool init
            pl.BlockSpec((E, H),     lambda i, *_: (0, 0)),       # w_ih0^T
            pl.BlockSpec((1, H),     lambda i, *_: (0, 0)),       # b0
            pl.BlockSpec((H, H),     lambda i, *_: (0, 0)),       # w_hh0^T
            pl.BlockSpec((H, H),     lambda i, *_: (0, 0)),       # w_ih1^T
            pl.BlockSpec((H, H),     lambda i, *_: (0, 0)),       # w_hh1^T
            pl.BlockSpec((1, H),     lambda i, *_: (0, 0)),       # b1
            pl.BlockSpec((O, H),     lambda i, *_: (0, 0)),       # w_fc
            pl.BlockSpec((1, O),     lambda i, *_: (0, 0)),       # b_fc
        ],
        out_specs=pl.BlockSpec((TB, O), lambda i, *_: (i, 0)),
        scratch_shapes=[
            pltpu.VMEM((S, TB, H), jnp.float32),   # hoisted input projection
            pltpu.VMEM((TB, H), jnp.float32),      # h0
            pltpu.VMEM((TB, H), jnp.float32),      # h1
            pltpu.VMEM((TB, H), jnp.float32),      # running masked max
        ],
    )

    out = pl.pallas_call(
        functools.partial(rnn_maxpool_kernel, chunk=chunk),
        out_shape=jax.ShapeDtypeStruct((B_pad, O), jnp.float32),
        grid_spec=grid_spec,
        compiler_params=pltpu.CompilerParams(
            dimension_semantics=("parallel",),
            vmem_limit_bytes=48 * 1024 * 1024,
        ),
    )(l_max_arr, emb_t, lens2, mx0,
      w_ih0, b0, w_hh0, w_ih1, w_hh1, b1, w_fc, b_fc)

    return jnp.squeeze(out[:B], axis=1)                  # sig_out.squeeze(1)


def reference_forward(x_ids, lengths_np, params):
    """Pure-JAX reference mirroring the PyTorch semantics."""
    emb = params["emb_table"][x_ids]                     # (B, S, E)
    B, S, _ = emb.shape
    H = params["w_hh0"].shape[0]

    def run_layer(inp, w_ih, w_hh, b_ih, b_hh):
        def step(h, x_t):
            h_new = jnp.tanh(x_t @ w_ih.T + b_ih + h @ w_hh.T + b_hh)
            return h_new, h_new
        _, outs = lax.scan(step, jnp.zeros((B, H), jnp.float32),
                           jnp.transpose(inp, (1, 0, 2)))
        return jnp.transpose(outs, (1, 0, 2))

    o = run_layer(emb, params["w_ih0"], params["w_hh0"],
                  params["b_ih0"], params["b_hh0"])
    o = run_layer(o, params["w_ih1"], params["w_hh1"],
                  params["b_ih1"], params["b_hh1"])

    l_max = int(np.max(lengths_np))
    t_idx = jnp.arange(S)
    valid = t_idx[None, :] < jnp.asarray(lengths_np)[:, None]        # (B, S)
    padded = jnp.where(valid[..., None], o, 0.0)[:, :l_max]          # (B, Lmax, H)
    pooled = jnp.max(padded, axis=1)                                 # (B, H)
    logits = pooled @ params["w_fc"].T + params["b_fc"]
    return jax.nn.sigmoid(logits)[:, 0]


def init_params(key, vocab_size, embedding_dim, hidden_dim, output_dim):
    ks = jax.random.split(key, 12)
    s = 1.0 / np.sqrt(hidden_dim)
    u = lambda k, shape: jax.random.uniform(k, shape, jnp.float32, -s, s)
    return {
        "emb_table": jax.random.normal(ks[0], (vocab_size, embedding_dim),
                                       jnp.float32),
        # nn.RNN layer 0
        "w_ih0": u(ks[1], (hidden_dim, embedding_dim)),
        "w_hh0": u(ks[2], (hidden_dim, hidden_dim)),
        "b_ih0": u(ks[3], (hidden_dim,)),
        "b_hh0": u(ks[4], (hidden_dim,)),
        # nn.RNN layer 1
        "w_ih1": u(ks[5], (hidden_dim, hidden_dim)),
        "w_hh1": u(ks[6], (hidden_dim, hidden_dim)),
        "b_ih1": u(ks[7], (hidden_dim,)),
        "b_hh1": u(ks[8], (hidden_dim,)),
        # fc
        "w_fc": u(ks[9], (output_dim, hidden_dim)),
        "b_fc": u(ks[10], (output_dim,)),
    }


if __name__ == "__main__":
    vocab_size, embedding_dim, hidden_dim, output_dim = 50, 16, 32, 1
    B, S = 8, 12

    key = jax.random.PRNGKey(0)
    kp, kx = jax.random.split(key)
    params = init_params(kp, vocab_size, embedding_dim, hidden_dim, output_dim)

    x_ids = jax.random.randint(kx, (B, S), 0, vocab_size, dtype=jnp.int32)
    lengths_np = np.array([10, 9, 10, 4, 7, 1, 8, 6], dtype=np.int32)  # max < S
    lengths = jnp.asarray(lengths_np)

    fwd = jax.jit(text_classifier_forward)
    out = jax.block_until_ready(fwd(x_ids, lengths, params))
    ref = jax.block_until_ready(reference_forward(x_ids, lengths_np, params))

    assert out.shape == (B,)
    np.testing.assert_allclose(np.asarray(out), np.asarray(ref),
                               rtol=1e-5, atol=1e-5)
    print("KERNEL_OK")
</pallas_src>

<mosaic_0001>
module attributes {stable_mosaic.version = 11 : i64} {
  func.func @rnn_maxpool_kernel(%arg0: i32, %arg1: memref<1xi32, #tpu.memory_space<smem>>, %arg2: memref<12x8x16xf32, #tpu.memory_space<vmem>>, %arg3: memref<8x1xi32, #tpu.memory_space<vmem>>, %arg4: memref<8x1xf32, #tpu.memory_space<vmem>>, %arg5: memref<16x32xf32, #tpu.memory_space<vmem>>, %arg6: memref<1x32xf32, #tpu.memory_space<vmem>>, %arg7: memref<32x32xf32, #tpu.memory_space<vmem>>, %arg8: memref<32x32xf32, #tpu.memory_space<vmem>>, %arg9: memref<32x32xf32, #tpu.memory_space<vmem>>, %arg10: memref<1x32xf32, #tpu.memory_space<vmem>>, %arg11: memref<1x32xf32, #tpu.memory_space<vmem>>, %arg12: memref<1x1xf32, #tpu.memory_space<vmem>>, %arg13: memref<8x1xf32, #tpu.memory_space<vmem>>, %arg14: memref<12x8x32xf32, #tpu.memory_space<vmem>>, %arg15: memref<8x32xf32, #tpu.memory_space<vmem>>, %arg16: memref<8x32xf32, #tpu.memory_space<vmem>>, %arg17: memref<8x32xf32, #tpu.memory_space<vmem>>) attributes {dimension_semantics = [#tpu.dimension_semantics<parallel>], iteration_bounds = array<i64: 1>, scalar_prefetch = 1 : i64, scratch_operands = 4 : i64, tpu.core_type = #tpu.core_type<tc>, window_params = [{transform_indices = @transform_0, window_bounds = array<i64: 12, 8, 16>}, {transform_indices = @transform_1, window_bounds = array<i64: 8, 1>}, {transform_indices = @transform_2, window_bounds = array<i64: 8, 1>}, {pipeline_mode = #tpu.pipeline_mode<synchronous>, transform_indices = @transform_3, window_bounds = array<i64: 16, 32>}, {pipeline_mode = #tpu.pipeline_mode<synchronous>, transform_indices = @transform_4, window_bounds = array<i64: 1, 32>}, {pipeline_mode = #tpu.pipeline_mode<synchronous>, transform_indices = @transform_5, window_bounds = array<i64: 32, 32>}, {pipeline_mode = #tpu.pipeline_mode<synchronous>, transform_indices = @transform_6, window_bounds = array<i64: 32, 32>}, {pipeline_mode = #tpu.pipeline_mode<synchronous>, transform_indices = @transform_7, window_bounds = array<i64: 32, 32>}, {pipeline_mode = #tpu.pipeline_mode<synchronous>, transform_indices = @transform_8, window_bounds = array<i64: 1, 32>}, {pipeline_mode = #tpu.pipeline_mode<synchronous>, transform_indices = @transform_9, window_bounds = array<i64: 1, 32>}, {pipeline_mode = #tpu.pipeline_mode<synchronous>, transform_indices = @transform_10, window_bounds = array<i64: 1, 1>}, {transform_indices = @transform_11, window_bounds = array<i64: 8, 1>}]} {
    %c0 = arith.constant 0 : index
    %c0_0 = arith.constant 0 : index
    %c0_1 = arith.constant 0 : index
    %0 = vector.load %arg2[%c0, %c0_0, %c0_1] : memref<12x8x16xf32, #tpu.memory_space<vmem>>, vector<12x8x16xf32>
    %1 = vector.shape_cast %0 : vector<12x8x16xf32> to vector<96x16xf32>
    %c0_2 = arith.constant 0 : index
    %c0_3 = arith.constant 0 : index
    %2 = vector.load %arg5[%c0_2, %c0_3] : memref<16x32xf32, #tpu.memory_space<vmem>>, vector<16x32xf32>
    %cst = arith.constant dense<0.000000e+00> : vector<96x32xf32>
    %3 = tpu.matmul %1, %2, %cst {dimension_numbers = #tpu.dot_dimension_numbers<[1], [0], [0], [1], [0, 0, 1, 1], [], []>} : vector<96x16xf32>, vector<16x32xf32>, vector<96x32xf32> -> vector<96x32xf32>
    %c0_4 = arith.constant 0 : index
    %c0_5 = arith.constant 0 : index
    %4 = vector.load %arg6[%c0_4, %c0_5] : memref<1x32xf32, #tpu.memory_space<vmem>>, vector<1x32xf32>
    %5 = vector.broadcast %4 : vector<1x32xf32> to vector<96x32xf32>
    %6 = arith.addf %3, %5 : vector<96x32xf32>
    %7 = vector.shape_cast %6 : vector<96x32xf32> to vector<12x8x32xf32>
    %c0_6 = arith.constant 0 : index
    %c0_7 = arith.constant 0 : index
    %c0_8 = arith.constant 0 : index
    %8 = vector.load %arg14[%c0_6, %c0_7, %c0_8] : memref<12x8x32xf32, #tpu.memory_space<vmem>>, vector<12x8x32xf32>
    tpu.vector_store %arg14[%c0_6, %c0_7, %c0_8], %7 {strides = array<i32>} : memref<12x8x32xf32, #tpu.memory_space<vmem>>, vector<12x8x32xf32>,
    %c0_9 = arith.constant 0 : index
    %c0_10 = arith.constant 0 : index
    %9 = vector.load %arg3[%c0_9, %c0_10] : memref<8x1xi32, #tpu.memory_space<vmem>>, vector<8x1xi32>
    %c0_11 = arith.constant 0 : index
    %c0_12 = arith.constant 0 : index
    %10 = vector.load %arg7[%c0_11, %c0_12] : memref<32x32xf32, #tpu.memory_space<vmem>>, vector<32x32xf32>
    %c0_13 = arith.constant 0 : index
    %c0_14 = arith.constant 0 : index
    %11 = vector.load %arg8[%c0_13, %c0_14] : memref<32x32xf32, #tpu.memory_space<vmem>>, vector<32x32xf32>
    %c0_15 = arith.constant 0 : index
    %c0_16 = arith.constant 0 : index
    %12 = vector.load %arg9[%c0_15, %c0_16] : memref<32x32xf32, #tpu.memory_space<vmem>>, vector<32x32xf32>
    %c0_17 = arith.constant 0 : index
    %c0_18 = arith.constant 0 : index
    %13 = vector.load %arg10[%c0_17, %c0_18] : memref<1x32xf32, #tpu.memory_space<vmem>>, vector<1x32xf32>
    %14 = vector.shape_cast %13 : vector<1x32xf32> to vector<1x32xf32>
    %15 = vector.broadcast %14 : vector<1x32xf32> to vector<8x32xf32>
    %cst_19 = arith.constant 0.000000e+00 : f32
    %16 = vector.broadcast %cst_19 : f32 to vector<8x32xf32>
    %c0_20 = arith.constant 0 : index
    %c0_21 = arith.constant 0 : index
    %17 = vector.load %arg15[%c0_20, %c0_21] : memref<8x32xf32, #tpu.memory_space<vmem>>, vector<8x32xf32>
    tpu.vector_store %arg15[%c0_20, %c0_21], %16 {strides = array<i32>} : memref<8x32xf32, #tpu.memory_space<vmem>>, vector<8x32xf32>,
    %cst_22 = arith.constant 0.000000e+00 : f32
    %18 = vector.broadcast %cst_22 : f32 to vector<8x32xf32>
    %c0_23 = arith.constant 0 : index
    %c0_24 = arith.constant 0 : index
    %19 = vector.load %arg16[%c0_23, %c0_24] : memref<8x32xf32, #tpu.memory_space<vmem>>, vector<8x32xf32>
    tpu.vector_store %arg16[%c0_23, %c0_24], %18 {strides = array<i32>} : memref<8x32xf32, #tpu.memory_space<vmem>>, vector<8x32xf32>,
    %c0_25 = arith.constant 0 : index
    %c0_26 = arith.constant 0 : index
    %20 = vector.load %arg4[%c0_25, %c0_26] : memref<8x1xf32, #tpu.memory_space<vmem>>, vector<8x1xf32>
    %21 = vector.shape_cast %20 : vector<8x1xf32> to vector<8x1xf32>
    %22 = vector.broadcast %21 : vector<8x1xf32> to vector<8x32xf32>
    %c0_27 = arith.constant 0 : index
    %c0_28 = arith.constant 0 : index
    %23 = vector.load %arg17[%c0_27, %c0_28] : memref<8x32xf32, #tpu.memory_space<vmem>>, vector<8x32xf32>
    tpu.vector_store %arg17[%c0_27, %c0_28], %22 {strides = array<i32>} : memref<8x32xf32, #tpu.memory_space<vmem>>, vector<8x32xf32>,
    %c0_29 = arith.constant 0 : index
    %24 = memref.load %arg1[%c0_29] : memref<1xi32, #tpu.memory_space<smem>>
    %c3_i32 = arith.constant 3 : i32
    %25 = arith.addi %24, %c3_i32 : i32
    %c4_i32 = arith.constant 4 : i32
    %26 = arith.divsi %25, %c4_i32 : i32
    %c0_i32 = arith.constant 0 : i32
    %27 = arith.subi %26, %c0_i32 : i32
    %c1_i32 = arith.constant 1 : i32
    %c1_i32_30 = arith.constant 1 : i32
    %28 = arith.subi %c1_i32, %c1_i32_30 : i32
    %29 = arith.addi %27, %28 : i32
    %c1_i32_31 = arith.constant 1 : i32
    %30 = arith.divsi %29, %c1_i32_31 : i32
    %c1_i32_32 = arith.constant 1 : i32
    %c0_i32_33 = arith.constant 0 : i32
    %cst_34 = arith.constant -1.000000e+30 : f32
    %c0_i32_35 = arith.constant 0 : i32
    %31 = arith.subi %30, %c0_i32_35 : i32
    %32 = arith.addi %c0_i32_35, %31 : i32
    %c1_i32_36 = arith.constant 1 : i32
    scf.for %arg18 = %c0_i32_35 to %32 step %c1_i32_36  : i32 {
      %48 = arith.muli %arg18, %c1_i32_32 : i32
      %49 = arith.addi %c0_i32_33, %48 : i32
      %c0_47 = arith.constant 0 : index
      %c0_48 = arith.constant 0 : index
      %50 = vector.load %arg15[%c0_47, %c0_48] : memref<8x32xf32, #tpu.memory_space<vmem>>, vector<8x32xf32>
      %c0_49 = arith.constant 0 : index
      %c0_50 = arith.constant 0 : index
      %51 = vector.load %arg16[%c0_49, %c0_50] : memref<8x32xf32, #tpu.memory_space<vmem>>, vector<8x32xf32>
      %c0_51 = arith.constant 0 : index
      %c0_52 = arith.constant 0 : index
      %52 = vector.load %arg17[%c0_51, %c0_52] : memref<8x32xf32, #tpu.memory_space<vmem>>, vector<8x32xf32>
      %c4_i32_53 = arith.constant 4 : i32
      %53 = arith.muli %49, %c4_i32_53 : i32
      %54 = tpu.assume_multiple %53, 4 : i32
      %c0_i32_54 = arith.constant 0 : i32
      %55 = arith.addi %54, %c0_i32_54 : i32
      %56 = arith.index_cast %55 : i32 to index
      %c0_55 = arith.constant 0 : index
      %c0_56 = arith.constant 0 : index
      %57 = vector.load %arg14[%56, %c0_55, %c0_56] : memref<12x8x32xf32, #tpu.memory_space<vmem>>, vector<1x8x32xf32>
      %58 = vector.shape_cast %57 : vector<1x8x32xf32> to vector<8x32xf32>
      %cst_57 = arith.constant dense<0.000000e+00> : vector<8x32xf32>
      %59 = tpu.matmul %51, %12, %cst_57 {dimension_numbers = #tpu.dot_dimension_numbers<[1], [0], [0], [1], [0, 0, 1, 1], [], []>} : vector<8x32xf32>, vector<32x32xf32>, vector<8x32xf32> -> vector<8x32xf32>
      %60 = arith.addf %59, %15 : vector<8x32xf32>
      %cst_58 = arith.constant dense<0.000000e+00> : vector<8x32xf32>
      %61 = tpu.matmul %50, %10, %cst_58 {dimension_numbers = #tpu.dot_dimension_numbers<[1], [0], [0], [1], [0, 0, 1, 1], [], []>} : vector<8x32xf32>, vector<32x32xf32>, vector<8x32xf32> -> vector<8x32xf32>
      %62 = arith.addf %58, %61 : vector<8x32xf32>
      %63 = math.tanh %62 : vector<8x32xf32>
      %cst_59 = arith.constant dense<0.000000e+00> : vector<8x32xf32>
      %64 = tpu.matmul %63, %11, %cst_59 {dimension_numbers = #tpu.dot_dimension_numbers<[1], [0], [0], [1], [0, 0, 1, 1], [], []>} : vector<8x32xf32>, vector<32x32xf32>, vector<8x32xf32> -> vector<8x32xf32>
      %65 = arith.addf %64, %60 : vector<8x32xf32>
      %66 = math.tanh %65 : vector<8x32xf32>
      %67 = vector.broadcast %55 : i32 to vector<8x1xi32>
      %68 = arith.cmpi slt, %67, %9 : vector<8x1xi32>
      %cst_60 = arith.constant 0.000000e+00 : f32
      %69 = vector.broadcast %cst_60 : f32 to vector<8x1xf32>
      %70 = vector.broadcast %cst_34 : f32 to vector<8x1xf32>
      %71 = arith.select %68, %69, %70 : vector<8x1xi1>, vector<8x1xf32>
      %72 = vector.broadcast %71 : vector<8x1xf32> to vector<8x32xf32>
      %73 = arith.addf %66, %72 : vector<8x32xf32>
      %74 = arith.maximumf %52, %73 : vector<8x32xf32>
      %c1_i32_61 = arith.constant 1 : i32
      %75 = arith.addi %54, %c1_i32_61 : i32
      %76 = arith.index_cast %75 : i32 to index
      %c0_62 = arith.constant 0 : index
      %c0_63 = arith.constant 0 : index
      %77 = vector.load %arg14[%76, %c0_62, %c0_63] : memref<12x8x32xf32, #tpu.memory_space<vmem>>, vector<1x8x32xf32>
      %78 = vector.shape_cast %77 : vector<1x8x32xf32> to vector<8x32xf32>
      %cst_64 = arith.constant dense<0.000000e+00> : vector<8x32xf32>
      %79 = tpu.matmul %66, %12, %cst_64 {dimension_numbers = #tpu.dot_dimension_numbers<[1], [0], [0], [1], [0, 0, 1, 1], [], []>} : vector<8x32xf32>, vector<32x32xf32>, vector<8x32xf32> -> vector<8x32xf32>
      %80 = arith.addf %79, %15 : vector<8x32xf32>
      %cst_65 = arith.constant dense<0.000000e+00> : vector<8x32xf32>
      %81 = tpu.matmul %63, %10, %cst_65 {dimension_numbers = #tpu.dot_dimension_numbers<[1], [0], [0], [1], [0, 0, 1, 1], [], []>} : vector<8x32xf32>, vector<32x32xf32>, vector<8x32xf32> -> vector<8x32xf32>
      %82 = arith.addf %78, %81 : vector<8x32xf32>
      %83 = math.tanh %82 : vector<8x32xf32>
      %cst_66 = arith.constant dense<0.000000e+00> : vector<8x32xf32>
      %84 = tpu.matmul %83, %11, %cst_66 {dimension_numbers = #tpu.dot_dimension_numbers<[1], [0], [0], [1], [0, 0, 1, 1], [], []>} : vector<8x32xf32>, vector<32x32xf32>, vector<8x32xf32> -> vector<8x32xf32>
      %85 = arith.addf %84, %80 : vector<8x32xf32>
      %86 = math.tanh %85 : vector<8x32xf32>
      %87 = vector.broadcast %75 : i32 to vector<8x1xi32>
      %88 = arith.cmpi slt, %87, %9 : vector<8x1xi32>
      %cst_67 = arith.constant 0.000000e+00 : f32
      %89 = vector.broadcast %cst_67 : f32 to vector<8x1xf32>
      %90 = vector.broadcast %cst_34 : f32 to vector<8x1xf32>
      %91 = arith.select %88, %89, %90 : vector<8x1xi1>, vector<8x1xf32>
      %92 = vector.broadcast %91 : vector<8x1xf32> to vector<8x32xf32>
      %93 = arith.addf %86, %92 : vector<8x32xf32>
      %94 = arith.maximumf %74, %93 : vector<8x32xf32>
      %c2_i32 = arith.constant 2 : i32
      %95 = arith.addi %54, %c2_i32 : i32
      %96 = arith.index_cast %95 : i32 to index
      %c0_68 = arith.constant 0 : index
      %c0_69 = arith.constant 0 : index
      %97 = vector.load %arg14[%96, %c0_68, %c0_69] : memref<12x8x32xf32, #tpu.memory_space<vmem>>, vector<1x8x32xf32>
      %98 = vector.shape_cast %97 : vector<1x8x32xf32> to vector<8x32xf32>
      %cst_70 = arith.constant dense<0.000000e+00> : vector<8x32xf32>
      %99 = tpu.matmul %86, %12, %cst_70 {dimension_numbers = #tpu.dot_dimension_numbers<[1], [0], [0], [1], [0, 0, 1, 1], [], []>} : vector<8x32xf32>, vector<32x32xf32>, vector<8x32xf32> -> vector<8x32xf32>
      %100 = arith.addf %99, %15 : vector<8x32xf32>
      %cst_71 = arith.constant dense<0.000000e+00> : vector<8x32xf32>
      %101 = tpu.matmul %83, %10, %cst_71 {dimension_numbers = #tpu.dot_dimension_numbers<[1], [0], [0], [1], [0, 0, 1, 1], [], []>} : vector<8x32xf32>, vector<32x32xf32>, vector<8x32xf32> -> vector<8x32xf32>
      %102 = arith.addf %98, %101 : vector<8x32xf32>
      %103 = math.tanh %102 : vector<8x32xf32>
      %cst_72 = arith.constant dense<0.000000e+00> : vector<8x32xf32>
      %104 = tpu.matmul %103, %11, %cst_72 {dimension_numbers = #tpu.dot_dimension_numbers<[1], [0], [0], [1], [0, 0, 1, 1], [], []>} : vector<8x32xf32>, vector<32x32xf32>, vector<8x32xf32> -> vector<8x32xf32>
      %105 = arith.addf %104, %100 : vector<8x32xf32>
      %106 = math.tanh %105 : vector<8x32xf32>
      %107 = vector.broadcast %95 : i32 to vector<8x1xi32>
      %108 = arith.cmpi slt, %107, %9 : vector<8x1xi32>
      %cst_73 = arith.constant 0.000000e+00 : f32
      %109 = vector.broadcast %cst_73 : f32 to vector<8x1xf32>
      %110 = vector.broadcast %cst_34 : f32 to vector<8x1xf32>
      %111 = arith.select %108, %109, %110 : vector<8x1xi1>, vector<8x1xf32>
      %112 = vector.broadcast %111 : vector<8x1xf32> to vector<8x32xf32>
      %113 = arith.addf %106, %112 : vector<8x32xf32>
      %114 = arith.maximumf %94, %113 : vector<8x32xf32>
      %c3_i32_74 = arith.constant 3 : i32
      %115 = arith.addi %54, %c3_i32_74 : i32
      %116 = arith.index_cast %115 : i32 to index
      %c0_75 = arith.constant 0 : index
      %c0_76 = arith.constant 0 : index
      %117 = vector.load %arg14[%116, %c0_75, %c0_76] : memref<12x8x32xf32, #tpu.memory_space<vmem>>, vector<1x8x32xf32>
      %118 = vector.shape_cast %117 : vector<1x8x32xf32> to vector<8x32xf32>
      %cst_77 = arith.constant dense<0.000000e+00> : vector<8x32xf32>
      %119 = tpu.matmul %106, %12, %cst_77 {dimension_numbers = #tpu.dot_dimension_numbers<[1], [0], [0], [1], [0, 0, 1, 1], [], []>} : vector<8x32xf32>, vector<32x32xf32>, vector<8x32xf32> -> vector<8x32xf32>
      %120 = arith.addf %119, %15 : vector<8x32xf32>
      %cst_78 = arith.constant dense<0.000000e+00> : vector<8x32xf32>
      %121 = tpu.matmul %103, %10, %cst_78 {dimension_numbers = #tpu.dot_dimension_numbers<[1], [0], [0], [1], [0, 0, 1, 1], [], []>} : vector<8x32xf32>, vector<32x32xf32>, vector<8x32xf32> -> vector<8x32xf32>
      %122 = arith.addf %118, %121 : vector<8x32xf32>
      %123 = math.tanh %122 : vector<8x32xf32>
      %cst_79 = arith.constant dense<0.000000e+00> : vector<8x32xf32>
      %124 = tpu.matmul %123, %11, %cst_79 {dimension_numbers = #tpu.dot_dimension_numbers<[1], [0], [0], [1], [0, 0, 1, 1], [], []>} : vector<8x32xf32>, vector<32x32xf32>, vector<8x32xf32> -> vector<8x32xf32>
      %125 = arith.addf %124, %120 : vector<8x32xf32>
      %126 = math.tanh %125 : vector<8x32xf32>
      %127 = vector.broadcast %115 : i32 to vector<8x1xi32>
      %128 = arith.cmpi slt, %127, %9 : vector<8x1xi32>
      %cst_80 = arith.constant 0.000000e+00 : f32
      %129 = vector.broadcast %cst_80 : f32 to vector<8x1xf32>
      %130 = vector.broadcast %cst_34 : f32 to vector<8x1xf32>
      %131 = arith.select %128, %129, %130 : vector<8x1xi1>, vector<8x1xf32>
      %132 = vector.broadcast %131 : vector<8x1xf32> to vector<8x32xf32>
      %133 = arith.addf %126, %132 : vector<8x32xf32>
      %134 = arith.maximumf %114, %133 : vector<8x32xf32>
      %c0_81 = arith.constant 0 : index
      %c0_82 = arith.constant 0 : index
      %135 = vector.load %arg15[%c0_81, %c0_82] : memref<8x32xf32, #tpu.memory_space<vmem>>, vector<8x32xf32>
      tpu.vector_store %arg15[%c0_81, %c0_82], %123 {strides = array<i32>} : memref<8x32xf32, #tpu.memory_space<vmem>>, vector<8x32xf32>,
      %c0_83 = arith.constant 0 : index
      %c0_84 = arith.constant 0 : index
      %136 = vector.load %arg16[%c0_83, %c0_84] : memref<8x32xf32, #tpu.memory_space<vmem>>, vector<8x32xf32>
      tpu.vector_store %arg16[%c0_83, %c0_84], %126 {strides = array<i32>} : memref<8x32xf32, #tpu.memory_space<vmem>>, vector<8x32xf32>,
      %c0_85 = arith.constant 0 : index
      %c0_86 = arith.constant 0 : index
      %137 = vector.load %arg17[%c0_85, %c0_86] : memref<8x32xf32, #tpu.memory_space<vmem>>, vector<8x32xf32>
      tpu.vector_store %arg17[%c0_85, %c0_86], %134 {strides = array<i32>} : memref<8x32xf32, #tpu.memory_space<vmem>>, vector<8x32xf32>,
    }
    %c0_37 = arith.constant 0 : index
    %c0_38 = arith.constant 0 : index
    %33 = vector.load %arg17[%c0_37, %c0_38] : memref<8x32xf32, #tpu.memory_space<vmem>>, vector<8x32xf32>
    %c0_39 = arith.constant 0 : index
    %c0_40 = arith.constant 0 : index
    %34 = vector.load %arg11[%c0_39, %c0_40] : memref<1x32xf32, #tpu.memory_space<vmem>>, vector<1x32xf32>
    %35 = vector.broadcast %34 : vector<1x32xf32> to vector<8x32xf32>
    %36 = arith.mulf %33, %35 : vector<8x32xf32>
    %cst_41 = arith.constant dense<0.000000e+00> : vector<8xf32>
    %37 = vector.multi_reduction <add>, %36, %cst_41 [1] : vector<8x32xf32> to vector<8xf32>
    %38 = vector.shape_cast %37 : vector<8xf32> to vector<8x1xf32>
    %c0_42 = arith.constant 0 : index
    %c0_43 = arith.constant 0 : index
    %39 = vector.load %arg12[%c0_42, %c0_43] : memref<1x1xf32, #tpu.memory_space<vmem>>, vector<1x1xf32>
    %40 = vector.broadcast %39 : vector<1x1xf32> to vector<8x1xf32>
    %41 = arith.addf %38, %40 : vector<8x1xf32>
    %42 = arith.negf %41 : vector<8x1xf32>
    %43 = math.exp %42 : vector<8x1xf32>
    %cst_44 = arith.constant 1.000000e+00 : f32
    %44 = vector.broadcast %cst_44 : f32 to vector<8x1xf32>
    %45 = arith.addf %44, %43 : vector<8x1xf32>
    %46 = arith.divf %44, %45 : vector<8x1xf32>
    %c0_45 = arith.constant 0 : index
    %c0_46 = arith.constant 0 : index
    %47 = vector.load %arg13[%c0_45, %c0_46] : memref<8x1xf32, #tpu.memory_space<vmem>>, vector<8x1xf32>
    tpu.vector_store %arg13[%c0_45, %c0_46], %46 {strides = array<i32>} : memref<8x1xf32, #tpu.memory_space<vmem>>, vector<8x1xf32>,
    return
  }
  func.func @transform_0(%arg0: i32, %arg1: memref<1xi32, #tpu.memory_space<smem>>) -> (i32, i32, i32) {
    %c0_i32 = arith.constant 0 : i32
    %c0_i32_0 = arith.constant 0 : i32
    %c0_i32_1 = arith.constant 0 : i32
    return %c0_i32, %arg0, %c0_i32_0 : i32, i32, i32
  }
  func.func @transform_1(%arg0: i32, %arg1: memref<1xi32, #tpu.memory_space<smem>>) -> (i32, i32) {
    %c0_i32 = arith.constant 0 : i32
    %c0_i32_0 = arith.constant 0 : i32
    return %arg0, %c0_i32 : i32, i32
  }
  func.func @transform_2(%arg0: i32, %arg1: memref<1xi32, #tpu.memory_space<smem>>) -> (i32, i32) {
    %c0_i32 = arith.constant 0 : i32
    %c0_i32_0 = arith.constant 0 : i32
    return %arg0, %c0_i32 : i32, i32
  }
  func.func @transform_3(%arg0: i32, %arg1: memref<1xi32, #tpu.memory_space<smem>>) -> (i32, i32) {
    %c0_i32 = arith.constant 0 : i32
    %c0_i32_0 = arith.constant 0 : i32
    %c0_i32_1 = arith.constant 0 : i32
    return %c0_i32, %c0_i32_0 : i32, i32
  }
  func.func @transform_4(%arg0: i32, %arg1: memref<1xi32, #tpu.memory_space<smem>>) -> (i32, i32) {
    %c0_i32 = arith.constant 0 : i32
    %c0_i32_0 = arith.constant 0 : i32
    %c0_i32_1 = arith.constant 0 : i32
    return %c0_i32, %c0_i32_0 : i32, i32
  }
  func.func @transform_5(%arg0: i32, %arg1: memref<1xi32, #tpu.memory_space<smem>>) -> (i32, i32) {
    %c0_i32 = arith.constant 0 : i32
    %c0_i32_0 = arith.constant 0 : i32
    %c0_i32_1 = arith.constant 0 : i32
    return %c0_i32, %c0_i32_0 : i32, i32
  }
  func.func @transform_6(%arg0: i32, %arg1: memref<1xi32, #tpu.memory_space<smem>>) -> (i32, i32) {
    %c0_i32 = arith.constant 0 : i32
    %c0_i32_0 = arith.constant 0 : i32
    %c0_i32_1 = arith.constant 0 : i32
    return %c0_i32, %c0_i32_0 : i32, i32
  }
  func.func @transform_7(%arg0: i32, %arg1: memref<1xi32, #tpu.memory_space<smem>>) -> (i32, i32) {
    %c0_i32 = arith.constant 0 : i32
    %c0_i32_0 = arith.constant 0 : i32
    %c0_i32_1 = arith.constant 0 : i32
    return %c0_i32, %c0_i32_0 : i32, i32
  }
  func.func @transform_8(%arg0: i32, %arg1: memref<1xi32, #tpu.memory_space<smem>>) -> (i32, i32) {
    %c0_i32 = arith.constant 0 : i32
    %c0_i32_0 = arith.constant 0 : i32
    %c0_i32_1 = arith.constant 0 : i32
    return %c0_i32, %c0_i32_0 : i32, i32
  }
  func.func @transform_9(%arg0: i32, %arg1: memref<1xi32, #tpu.memory_space<smem>>) -> (i32, i32) {
    %c0_i32 = arith.constant 0 : i32
    %c0_i32_0 = arith.constant 0 : i32
    %c0_i32_1 = arith.constant 0 : i32
    return %c0_i32, %c0_i32_0 : i32, i32
  }
  func.func @transform_10(%arg0: i32, %arg1: memref<1xi32, #tpu.memory_space<smem>>) -> (i32, i32) {
    %c0_i32 = arith.constant 0 : i32
    %c0_i32_0 = arith.constant 0 : i32
    %c0_i32_1 = arith.constant 0 : i32
    return %c0_i32, %c0_i32_0 : i32, i32
  }
  func.func @transform_11(%arg0: i32, %arg1: memref<1xi32, #tpu.memory_space<smem>>) -> (i32, i32) {
    %c0_i32 = arith.constant 0 : i32
    %c0_i32_0 = arith.constant 0 : i32
    return %arg0, %c0_i32 : i32, i32
  }
}

</mosaic_0001>

<llo_original>
// kernel: text_classifier_forward.1
$region0: #{text_classifier_forward.1}
  #allocation0 [shape = 'u32[]', space=smem, size = 0x4, offset = 0x4, fixed_abs, tag = 'smem constant byte address 0x4 - core index']
  #allocation1 [shape = 'u32[144,128]{1,0:T(1,128)}', space=vmem, size = 0x12000, scoped, tag = 'internal scratch']
  #allocation2 [shape = 'f32[12,8,32]{2,1,0:T(8,128)}', space=vmem, size = 0xc000, scoped, tag = 'scratch operand']
  #allocation3 [shape = 'f32[8,32]{1,0:T(8,128)}', space=vmem, size = 0x1000, scoped, tag = 'scratch operand']
  #allocation4 [shape = 'f32[8,32]{1,0:T(8,128)}', space=vmem, size = 0x1000, scoped, tag = 'scratch operand']
  #allocation5 [shape = 'f32[8,32]{1,0:T(8,128)}', space=vmem, size = 0x1000, scoped, tag = 'scratch operand']
  #allocation6 [shape = 's32[1]{0}', space=sflag, size = 0x4, scoped, tag = 'scoped memory for text_classifier_forward.1']
  #allocation7 [shape = 's32[1]{0:T(128)S(6)}', space=smem, size = 0x200, scoped, tag = 'prefetched SMEM operand 0']
  #allocation8 [shape = 'f32[1,1]{1,0:T(1,128)S(1)}', space=vmem, size = 0x200, scoped, tag = 'scoped memory for text_classifier_forward.1']
  %s0 = inlined_call_operand.<no memory space> [shape: s32[1], index: 0, kind: input, shape index: {}]
  %s1 = inlined_call_operand.vmem [shape: f32[12,8,16], index: 1, kind: input, shape index: {}]
  %s2 = inlined_call_operand.vmem [shape: s32[8,1], index: 2, kind: input, shape index: {}]
  %s3 = inlined_call_operand.vmem [shape: f32[8,1], index: 3, kind: input, shape index: {}]
  %s4 = inlined_call_operand.vmem [shape: f32[16,32], index: 4, kind: input, shape index: {}]
  %s5 = inlined_call_operand.vmem [shape: f32[1,32], index: 5, kind: input, shape index: {}]
  %s6 = inlined_call_operand.vmem [shape: f32[32,32], index: 6, kind: input, shape index: {}]
  %s7 = inlined_call_operand.vmem [shape: f32[32,32], index: 7, kind: input, shape index: {}]
  %s8 = inlined_call_operand.vmem [shape: f32[32,32], index: 8, kind: input, shape index: {}]
  %s9 = inlined_call_operand.vmem [shape: f32[1,32], index: 9, kind: input, shape index: {}]
  %s10 = inlined_call_operand.vmem [shape: f32[1,32], index: 10, kind: input, shape index: {}]
  %s11 = inlined_call_operand.<no memory space> [shape: f32[1,1], index: 11, kind: input, shape index: {}]
  %s12 = inlined_call_operand.vmem [shape: f32[8,1], index: 12, kind: output, shape index: {}]
  %s13 = sld [smem:[#allocation0]]
  $region61: #{text_classifier_forward.1} parent=0
    _
  %s15 = ssub.s32 1, %s13
  %s16 = scalar_select 0, %s15, %s13
  %17 = sst [smem:[#allocation7]] %s0
  %v18 = vstv %s11
  %19 = vst [vmem:[#allocation8] sm:$0x1] %v18
  // Predicated region
  $region2: #{text_classifier_forward.1} parent=0 // pred_check
    _
  $region3: #{text_classifier_forward.1} parent=0 // pred_check_branch
    %21 = sbr.rel (0) target = $region5
  $region4: #{text_classifier_forward.1} parent=0 // pred_region
    _
  $region5: #{text_classifier_forward.1} parent=0 // pred_fallthru
    _
  // Predicated region
  $region6: #{text_classifier_forward.1} parent=0 // pred_check
    _
  $region7: #{text_classifier_forward.1} parent=0 // pred_check_branch
    %23 = sbr.rel (0) target = $region9
  $region8: #{text_classifier_forward.1} parent=0 // pred_region
    _
  $region9: #{text_classifier_forward.1} parent=0 // pred_fallthru
    _
  // Predicated region
  $region10: #{text_classifier_forward.1} parent=0 // pred_check
    _
  $region11: #{text_classifier_forward.1} parent=0 // pred_check_branch
    %25 = sbr.rel (0) target = $region13
  $region12: #{text_classifier_forward.1} parent=0 // pred_region
    _
  $region13: #{text_classifier_forward.1} parent=0 // pred_fallthru
    _
  // Predicated region
  $region14: #{text_classifier_forward.1} parent=0 // pred_check
    _
  $region15: #{text_classifier_forward.1} parent=0 // pred_check_branch
    %27 = sbr.rel (0) target = $region17
  $region16: #{text_classifier_forward.1} parent=0 // pred_region
    _
  $region17: #{text_classifier_forward.1} parent=0 // pred_fallthru
    _
  // Predicated region
  $region18: #{text_classifier_forward.1} parent=0 // pred_check
    _
  $region19: #{text_classifier_forward.1} parent=0 // pred_check_branch
    %29 = sbr.rel (0) target = $region21
  $region20: #{text_classifier_forward.1} parent=0 // pred_region
    _
  $region21: #{text_classifier_forward.1} parent=0 // pred_fallthru
    _
  // Predicated region
  $region22: #{text_classifier_forward.1} parent=0 // pred_check
    _
  $region23: #{text_classifier_forward.1} parent=0 // pred_check_branch
    %31 = sbr.rel (0) target = $region25
  $region24: #{text_classifier_forward.1} parent=0 // pred_region
    _
  $region25: #{text_classifier_forward.1} parent=0 // pred_fallthru
    _
  // Predicated region
  $region26: #{text_classifier_forward.1} parent=0 // pred_check
    _
  $region27: #{text_classifier_forward.1} parent=0 // pred_check_branch
    %33 = sbr.rel (0) target = $region29
  $region28: #{text_classifier_forward.1} parent=0 // pred_region
    _
  $region29: #{text_classifier_forward.1} parent=0 // pred_fallthru
    _
  // Predicated region
  $region30: #{text_classifier_forward.1} parent=0 // pred_check
    _
  $region31: #{text_classifier_forward.1} parent=0 // pred_check_branch
    %35 = sbr.rel (0) target = $region33
  $region32: #{text_classifier_forward.1} parent=0 // pred_region
    _
  $region33: #{text_classifier_forward.1} parent=0 // pred_fallthru
    _
  // Predicated region
  $region34: #{text_classifier_forward.1} parent=0 // pred_check
    _
  $region35: #{text_classifier_forward.1} parent=0 // pred_check_branch
    %37 = sbr.rel (0) target = $region37
  $region36: #{text_classifier_forward.1} parent=0 // pred_region
    _
  $region37: #{text_classifier_forward.1} parent=0 // pred_fallthru
    _
  // Predicated region
  $region38: #{text_classifier_forward.1} parent=0 // pred_check
    _
  $region39: #{text_classifier_forward.1} parent=0 // pred_check_branch
    %39 = sbr.rel (0) target = $region41
  $region40: #{text_classifier_forward.1} parent=0 // pred_region
    _
  $region41: #{text_classifier_forward.1} parent=0 // pred_fallthru
    _
  // Predicated region
  $region42: #{text_classifier_forward.1} parent=0 // pred_check
    _
  $region43: #{text_classifier_forward.1} parent=0 // pred_check_branch
    %41 = sbr.rel (0) target = $region45
  $region44: #{text_classifier_forward.1} parent=0 // pred_region
    _
  $region45: #{text_classifier_forward.1} parent=0 // pred_fallthru
    _
  %v42 = vld [vmem:[%s1] sm:$0xff]
  %v43 = vld [vmem:[%s1 + $0x8] sm:$0xff]
  %v44 = vld [vmem:[%s1 + $0x10] sm:$0xff]
  %v45 = vld [vmem:[%s1 + $0x18] sm:$0xff]
  %v46 = vld [vmem:[%s1 + $0x20] sm:$0xff]
  %v47 = vld [vmem:[%s1 + $0x28] sm:$0xff]
  %v48 = vld [vmem:[%s1 + $0x30] sm:$0xff]
  %v49 = vld [vmem:[%s1 + $0x38] sm:$0xff]
  %v50 = vld [vmem:[%s1 + $0x40] sm:$0xff]
  %v51 = vld [vmem:[%s1 + $0x48] sm:$0xff]
  %v52 = vld [vmem:[%s1 + $0x50] sm:$0xff]
  %v53 = vld [vmem:[%s1 + $0x58] sm:$0xff]
  %v54 = vld [vmem:[%s4] sm:$0xff]
  %v55 = vld [vmem:[%s4 + $0x8] sm:$0xff]
  %v56 = vld [vmem:[%s5] sm:$0x1]
  %v58 = vlaneseq
  %v59 = vshrl.u32 %v58, 7
  %v60 = vsub.s32 0, %v59
  %v61 = vrot.slane %v56, %v60
  %vm63 = vcmask 130048
  %v65 = vsel %vm63, %v42, 0
  %v68 = vsel %vm63, %v43, 0
  %v71 = vsel %vm63, %v44, 0
  %v74 = vsel %vm63, %v45, 0
  %v77 = vsel %vm63, %v46, 0
  %v80 = vsel %vm63, %v47, 0
  %v83 = vsel %vm63, %v48, 0
  %v86 = vsel %vm63, %v49, 0
  %v89 = vsel %vm63, %v50, 0
  %v92 = vsel %vm63, %v51, 0
  %v95 = vsel %vm63, %v52, 0
  %v98 = vsel %vm63, %v53, 0
  %100 = vmatprep.subr.mxu0 0.0
  %101 = vmatpush1.msra.mxu0 %v54
  %102 = vmatprep.subr.mxu0 0.0
  %103 = vmatpush1.msra.mxu0 %v55
  %104 = vmatprep.subr.mxu0 0.0
  %105 = vmatpush1.msra.mxu0 0.0
  %106 = vmatprep.subr.mxu0 0.0
  %107 = vmatpush1.msra.mxu0 0.0
  %108 = vmatprep.subr.mxu0 0.0
  %109 = vmatpush1.msra.mxu0 0.0
  %110 = vmatprep.subr.mxu0 0.0
  %111 = vmatpush1.msra.mxu0 0.0
  %112 = vmatprep.subr.mxu0 0.0
  %113 = vmatpush1.msra.mxu0 0.0
  %114 = vmatprep.subr.mxu0 0.0
  %115 = vmatpush1.msra.mxu0 0.0
  %116 = vmatprep.subr.mxu0 0.0
  %117 = vmatpush1.msra.mxu0 0.0
  %118 = vmatprep.subr.mxu0 0.0
  %119 = vmatpush1.msra.mxu0 0.0
  %120 = vmatprep.subr.mxu0 0.0
  %121 = vmatpush1.msra.mxu0 0.0
  %122 = vmatprep.subr.mxu0 0.0
  %123 = vmatpush1.msra.mxu0 0.0
  %124 = vmatprep.subr.mxu0 0.0
  %125 = vmatpush1.msra.mxu0 0.0
  %126 = vmatprep.subr.mxu0 0.0
  %127 = vmatpush1.msra.mxu0 0.0
  %128 = vmatprep.subr.mxu0 0.0
  %129 = vmatpush1.msra.mxu0 0.0
  %130 = vmatprep.subr.mxu0 0.0
  %131 = vmatpush1.msra.mxu0 0.0
  %132 = vmatprep.subr.mxu0 0.0
  %133 = vmatpush1.msra.mxu0 0.0
  %134 = vmatprep.subr.mxu0 0.0
  %135 = vmatpush1.msra.mxu0 0.0
  %136 = vmatprep.subr.mxu0 0.0
  %137 = vmatpush1.msra.mxu0 0.0
  %138 = vmatprep.subr.mxu0 0.0
  %139 = vmatpush1.msra.mxu0 0.0
  %140 = vmatprep.subr.mxu0 0.0
  %141 = vmatpush1.msra.mxu0 0.0
  %142 = vmatprep.subr.mxu0 0.0
  %143 = vmatpush1.msra.mxu0 0.0
  %144 = vmatprep.subr.mxu0 0.0
  %145 = vmatpush1.msra.mxu0 0.0
  %146 = vmatprep.subr.mxu0 0.0
  %147 = vmatpush1.msra.mxu0 0.0
  %148 = vmatprep.subr.mxu0 0.0
  %149 = vmatpush1.msra.mxu0 0.0
  %150 = vmatprep.subr.mxu0 0.0
  %151 = vmatpush1.msra.mxu0 0.0
  %152 = vmatprep.subr.mxu0 0.0
  %153 = vmatpush1.msra.mxu0 0.0
  %154 = vmatprep.subr.mxu0 0.0
  %155 = vmatpush1.msra.mxu0 0.0
  %156 = vmatprep.subr.mxu0 0.0
  %157 = vmatpush1.msra.mxu0 0.0
  %158 = vmatprep.subr.mxu0 0.0
  %159 = vmatpush1.msra.mxu0 0.0
  %160 = vmatprep.subr.mxu0 0.0
  %161 = vmatpush1.msra.mxu0 0.0
  %162 = vmatprep.subr.mxu0 0.0
  %163 = vmatpush1.msra.mxu0 0.0
  %164 = vmatprep.mubr.f32.mxu0 0.0
  %165 = vmatmul.mubr.f32.gmra.mrb[0].mxu0 %v65
  %v166 = vpop.f32.mrb[0].mxu0
  %v167 = vadd.f32 %v61, %v166
  %v168 = vpop.f32.mrb[0].mxu0
  %169 = vmatprep.mubr.f32.mxu0 0.0
  %170 = vmatmul.mubr.f32.gmra.mrb[0].mxu0 %v68
  %v171 = vpop.f32.mrb[0].mxu0
  %v172 = vadd.f32 %v61, %v171
  %v173 = vpop.f32.mrb[0].mxu0
  %174 = vmatprep.mubr.f32.mxu0 0.0
  %175 = vmatmul.mubr.f32.gmra.mrb[0].mxu0 %v71
  %v176 = vpop.f32.mrb[0].mxu0
  %v177 = vadd.f32 %v61, %v176
  %v178 = vpop.f32.mrb[0].mxu0
  %179 = vmatprep.mubr.f32.mxu0 0.0
  %180 = vmatmul.mubr.f32.gmra.mrb[0].mxu0 %v74
  %v181 = vpop.f32.mrb[0].mxu0
  %v182 = vadd.f32 %v61, %v181
  %v183 = vpop.f32.mrb[0].mxu0
  %184 = vmatprep.mubr.f32.mxu0 0.0
  %185 = vmatmul.mubr.f32.gmra.mrb[0].mxu0 %v77
  %v186 = vpop.f32.mrb[0].mxu0
  %v187 = vadd.f32 %v61, %v186
  %v188 = vpop.f32.mrb[0].mxu0
  %189 = vmatprep.mubr.f32.mxu0 0.0
  %190 = vmatmul.mubr.f32.gmra.mrb[0].mxu0 %v80
  %v191 = vpop.f32.mrb[0].mxu0
  %v192 = vadd.f32 %v61, %v191
  %v193 = vpop.f32.mrb[0].mxu0
  %194 = vmatprep.mubr.f32.mxu0 0.0
  %195 = vmatmul.mubr.f32.gmra.mrb[0].mxu0 %v83
  %v196 = vpop.f32.mrb[0].mxu0
  %v197 = vadd.f32 %v61, %v196
  %v198 = vpop.f32.mrb[0].mxu0
  %199 = vmatprep.mubr.f32.mxu0 0.0
  %200 = vmatmul.mubr.f32.gmra.mrb[0].mxu0 %v86
  %v201 = vpop.f32.mrb[0].mxu0
  %v202 = vadd.f32 %v61, %v201
  %v203 = vpop.f32.mrb[0].mxu0
  %204 = vmatprep.mubr.f32.mxu0 0.0
  %205 = vmatmul.mubr.f32.gmra.mrb[0].mxu0 %v89
  %v206 = vpop.f32.mrb[0].mxu0
  %v207 = vadd.f32 %v61, %v206
  %v208 = vpop.f32.mrb[0].mxu0
  %209 = vmatprep.mubr.f32.mxu0 0.0
  %210 = vmatmul.mubr.f32.gmra.mrb[0].mxu0 %v92
  %v211 = vpop.f32.mrb[0].mxu0
  %v212 = vadd.f32 %v61, %v211
  %v213 = vpop.f32.mrb[0].mxu0
  %214 = vmatprep.mubr.f32.mxu0 0.0
  %215 = vmatmul.mubr.f32.gmra.mrb[0].mxu0 %v95
  %v216 = vpop.f32.mrb[0].mxu0
  %v217 = vadd.f32 %v61, %v216
  %v218 = vpop.f32.mrb[0].mxu0
  %219 = vmatprep.mubr.f32.mxu0 0.0
  %220 = vmatmul.mubr.f32.gmra.mrb[0].mxu0 %v98
  %v221 = vpop.f32.mrb[0].mxu0
  %v222 = vadd.f32 %v61, %v221
  %v223 = vpop.f32.mrb[0].mxu0
  %224 = vdwg.mxu0
  %vm225 = vcmask 261120
  %226 = vst.msk [vmem:[#allocation2] sm:$0xff] %vm225, %v167
  %227 = vst.msk [vmem:[#allocation2 + $0x8] sm:$0xff] %vm225, %v172
  %228 = vst.msk [vmem:[#allocation2 + $0x10] sm:$0xff] %vm225, %v177
  %229 = vst.msk [vmem:[#allocation2 + $0x18] sm:$0xff] %vm225, %v182
  %230 = vst.msk [vmem:[#allocation2 + $0x20] sm:$0xff] %vm225, %v187
  %231 = vst.msk [vmem:[#allocation2 + $0x28] sm:$0xff] %vm225, %v192
  %232 = vst.msk [vmem:[#allocation2 + $0x30] sm:$0xff] %vm225, %v197
  %233 = vst.msk [vmem:[#allocation2 + $0x38] sm:$0xff] %vm225, %v202
  %234 = vst.msk [vmem:[#allocation2 + $0x40] sm:$0xff] %vm225, %v207
  %235 = vst.msk [vmem:[#allocation2 + $0x48] sm:$0xff] %vm225, %v212
  %236 = vst.msk [vmem:[#allocation2 + $0x50] sm:$0xff] %vm225, %v217
  %237 = vst.msk [vmem:[#allocation2 + $0x58] sm:$0xff] %vm225, %v222
  %v238 = vld [vmem:[%s2] sm:$0xff]
  %v239 = vld [vmem:[%s6] sm:$0xff]
  %v240 = vld [vmem:[%s6 + $0x8] sm:$0xff]
  %v241 = vld [vmem:[%s6 + $0x10] sm:$0xff]
  %v242 = vld [vmem:[%s6 + $0x18] sm:$0xff]
  %v243 = vld [vmem:[%s7] sm:$0xff]
  %v244 = vld [vmem:[%s7 + $0x8] sm:$0xff]
  %v245 = vld [vmem:[%s7 + $0x10] sm:$0xff]
  %v246 = vld [vmem:[%s7 + $0x18] sm:$0xff]
  %v247 = vld [vmem:[%s8] sm:$0xff]
  %v248 = vld [vmem:[%s8 + $0x8] sm:$0xff]
  %v249 = vld [vmem:[%s8 + $0x10] sm:$0xff]
  %v250 = vld [vmem:[%s8 + $0x18] sm:$0xff]
  %v251 = vld [vmem:[%s9] sm:$0x1]
  %v253 = vlaneseq
  %v254 = vshrl.u32 %v253, 7
  %v255 = vsub.s32 0, %v254
  %v256 = vrot.slane %v251, %v255
  %258 = vst.msk [vmem:[#allocation3] sm:$0xff] %vm225, 0.0
  %259 = vst.msk [vmem:[#allocation4] sm:$0xff] %vm225, 0.0
  %v260 = vld [vmem:[%s3] sm:$0xff]
  %262 = vset.pattern.permute.xlu0 0
  %263 = vperm.xlu0 %262, %v260
  %v264 = vpop.permute.xlu0 %263
  %266 = vst.msk [vmem:[#allocation5] sm:$0xff] %vm225, %v264
  %s267 = sld [smem:[#allocation7]]
  %s268 = sadd.s32 %s267, 3
  %p269 = scmp.lt.s32.totalorder %s268, 0
  %s270 = ssub.s32 0, %s268
  %s271 = scalar_select %p269, %s270, %s268
  %s272 = sshrl.u32 %s271, 2
  %s273 = ssub.s32 0, %s272
  %s274 = scalar_select %p269, %s273, %s272
  // While loop
  $region46: #{text_classifier_forward.1} parent=0 // loop_pre_header
    _
  $region47: #{text_classifier_forward.1} parent=0 // loop_header
    %s276 = sphi 0, %s278
    %p277 = scmp.ge.s32.totalorder %s276, %s274
  $region48: #{text_classifier_forward.1} parent=0 // loop_header_branch
    %280 = sbr.rel (%p277) target = $region52
  $region49: #{text_classifier_forward.1} parent=0 // loop_body
    %v281 = vld [vmem:[#allocation3] sm:$0xff]
    %v282 = vld [vmem:[#allocation4] sm:$0xff]
    %v283 = vld [vmem:[#allocation5] sm:$0xff]
    %s284 = smul.u32 %s276, 4
    %s285 = smul.u32 %s284, 8
    %s286 = scalar_lea.vmem [#allocation2], %s285
    %v287 = vld [vmem:[%s286] sm:$0xff]
    %v289 = vsel %vm225, %v282, 0
    %291 = vmatprep.subr.mxu0 0.0
    %292 = vmatpush1.msra.mxu0 %v247
    %293 = vmatprep.subr.mxu0 0.0
    %294 = vmatpush1.msra.mxu0 %v248
    %295 = vmatprep.subr.mxu0 0.0
    %296 = vmatpush1.msra.mxu0 %v249
    %297 = vmatprep.subr.mxu0 0.0
    %298 = vmatpush1.msra.mxu0 %v250
    %299 = vmatprep.subr.mxu0 0.0
    %300 = vmatpush1.msra.mxu0 0.0
    %301 = vmatprep.subr.mxu0 0.0
    %302 = vmatpush1.msra.mxu0 0.0
    %303 = vmatprep.subr.mxu0 0.0
    %304 = vmatpush1.msra.mxu0 0.0
    %305 = vmatprep.subr.mxu0 0.0
    %306 = vmatpush1.msra.mxu0 0.0
    %307 = vmatprep.subr.mxu0 0.0
    %308 = vmatpush1.msra.mxu0 0.0
    %309 = vmatprep.subr.mxu0 0.0
    %310 = vmatpush1.msra.mxu0 0.0
    %311 = vmatprep.subr.mxu0 0.0
    %312 = vmatpush1.msra.mxu0 0.0
    %313 = vmatprep.subr.mxu0 0.0
    %314 = vmatpush1.msra.mxu0 0.0
    %315 = vmatprep.subr.mxu0 0.0
    %316 = vmatpush1.msra.mxu0 0.0
    %317 = vmatprep.subr.mxu0 0.0
    %318 = vmatpush1.msra.mxu0 0.0
    %319 = vmatprep.subr.mxu0 0.0
    %320 = vmatpush1.msra.mxu0 0.0
    %321 = vmatprep.subr.mxu0 0.0
    %322 = vmatpush1.msra.mxu0 0.0
    %323 = vmatprep.subr.mxu0 0.0
    %324 = vmatpush1.msra.mxu0 0.0
    %325 = vmatprep.subr.mxu0 0.0
    %326 = vmatpush1.msra.mxu0 0.0
    %327 = vmatprep.subr.mxu0 0.0
    %328 = vmatpush1.msra.mxu0 0.0
    %329 = vmatprep.subr.mxu0 0.0
    %330 = vmatpush1.msra.mxu0 0.0
    %331 = vmatprep.subr.mxu0 0.0
    %332 = vmatpush1.msra.mxu0 0.0
    %333 = vmatprep.subr.mxu0 0.0
    %334 = vmatpush1.msra.mxu0 0.0
    %335 = vmatprep.subr.mxu0 0.0
    %336 = vmatpush1.msra.mxu0 0.0
    %337 = vmatprep.subr.mxu0 0.0
    %338 = vmatpush1.msra.mxu0 0.0
    %339 = vmatprep.subr.mxu0 0.0
    %340 = vmatpush1.msra.mxu0 0.0
    %341 = vmatprep.subr.mxu0 0.0
    %342 = vmatpush1.msra.mxu0 0.0
    %343 = vmatprep.subr.mxu0 0.0
    %344 = vmatpush1.msra.mxu0 0.0
    %345 = vmatprep.subr.mxu0 0.0
    %346 = vmatpush1.msra.mxu0 0.0
    %347 = vmatprep.subr.mxu0 0.0
    %348 = vmatpush1.msra.mxu0 0.0
    %349 = vmatprep.subr.mxu0 0.0
    %350 = vmatpush1.msra.mxu0 0.0
    %351 = vmatprep.subr.mxu0 0.0
    %352 = vmatpush1.msra.mxu0 0.0
    %353 = vmatprep.subr.mxu0 0.0
    %354 = vmatpush1.msra.mxu0 0.0
    %355 = vmatprep.mubr.f32.mxu0 0.0
    %356 = vmatmul.mubr.f32.gmra.mrb[0].mxu0 %v289
    %v357 = vpop.f32.mrb[0].mxu0
    %v358 = vadd.f32 %v256, %v357
    %v359 = vpop.f32.mrb[0].mxu0
    %360 = vdwg.mxu0
    %v362 = vsel %vm225, %v281, 0
    %364 = vmatprep.subr.mxu0 0.0
    %365 = vmatpush1.msra.mxu0 %v239
    %366 = vmatprep.subr.mxu0 0.0
    %367 = vmatpush1.msra.mxu0 %v240
    %368 = vmatprep.subr.mxu0 0.0
    %369 = vmatpush1.msra.mxu0 %v241
    %370 = vmatprep.subr.mxu0 0.0
    %371 = vmatpush1.msra.mxu0 %v242
    %372 = vmatprep.subr.mxu0 0.0
    %373 = vmatpush1.msra.mxu0 0.0
    %374 = vmatprep.subr.mxu0 0.0
    %375 = vmatpush1.msra.mxu0 0.0
    %376 = vmatprep.subr.mxu0 0.0
    %377 = vmatpush1.msra.mxu0 0.0
    %378 = vmatprep.subr.mxu0 0.0
    %379 = vmatpush1.msra.mxu0 0.0
    %380 = vmatprep.subr.mxu0 0.0
    %381 = vmatpush1.msra.mxu0 0.0
    %382 = vmatprep.subr.mxu0 0.0
    %383 = vmatpush1.msra.mxu0 0.0
    %384 = vmatprep.subr.mxu0 0.0
    %385 = vmatpush1.msra.mxu0 0.0
    %386 = vmatprep.subr.mxu0 0.0
    %387 = vmatpush1.msra.mxu0 0.0
    %388 = vmatprep.subr.mxu0 0.0
    %389 = vmatpush1.msra.mxu0 0.0
    %390 = vmatprep.subr.mxu0 0.0
    %391 = vmatpush1.msra.mxu0 0.0
    %392 = vmatprep.subr.mxu0 0.0
    %393 = vmatpush1.msra.mxu0 0.0
    %394 = vmatprep.subr.mxu0 0.0
    %395 = vmatpush1.msra.mxu0 0.0
    %396 = vmatprep.subr.mxu0 0.0
    %397 = vmatpush1.msra.mxu0 0.0
    %398 = vmatprep.subr.mxu0 0.0
    %399 = vmatpush1.msra.mxu0 0.0
    %400 = vmatprep.subr.mxu0 0.0
    %401 = vmatpush1.msra.mxu0 0.0
    %402 = vmatprep.subr.mxu0 0.0
    %403 = vmatpush1.msra.mxu0 0.0
    %404 = vmatprep.subr.mxu0 0.0
    %405 = vmatpush1.msra.mxu0 0.0
    %406 = vmatprep.subr.mxu0 0.0
    %407 = vmatpush1.msra.mxu0 0.0
    %408 = vmatprep.subr.mxu0 0.0
    %409 = vmatpush1.msra.mxu0 0.0
    %410 = vmatprep.subr.mxu0 0.0
    %411 = vmatpush1.msra.mxu0 0.0
    %412 = vmatprep.subr.mxu0 0.0
    %413 = vmatpush1.msra.mxu0 0.0
    %414 = vmatprep.subr.mxu0 0.0
    %415 = vmatpush1.msra.mxu0 0.0
    %416 = vmatprep.subr.mxu0 0.0
    %417 = vmatpush1.msra.mxu0 0.0
    %418 = vmatprep.subr.mxu0 0.0
    %419 = vmatpush1.msra.mxu0 0.0
    %420 = vmatprep.subr.mxu0 0.0
    %421 = vmatpush1.msra.mxu0 0.0
    %422 = vmatprep.subr.mxu0 0.0
    %423 = vmatpush1.msra.mxu0 0.0
    %424 = vmatprep.subr.mxu0 0.0
    %425 = vmatpush1.msra.mxu0 0.0
    %426 = vmatprep.subr.mxu0 0.0
    %427 = vmatpush1.msra.mxu0 0.0
    %428 = vmatprep.mubr.f32.mxu0 0.0
    %429 = vmatmul.mubr.f32.gmra.mrb[0].mxu0 %v362
    %v430 = vpop.f32.mrb[0].mxu0
    %v431 = vadd.f32 0.0, %v430
    %v432 = vpop.f32.mrb[0].mxu0
    %433 = vdwg.mxu0
    %v434 = vadd.f32 %v287, %v431
    %v435 = vtanh.pop %v434
    %v437 = vsel %vm225, %v435, 0
    %439 = vmatprep.subr.mxu0 0.0
    %440 = vmatpush1.msra.mxu0 %v243
    %441 = vmatprep.subr.mxu0 0.0
    %442 = vmatpush1.msra.mxu0 %v244
    %443 = vmatprep.subr.mxu0 0.0
    %444 = vmatpush1.msra.mxu0 %v245
    %445 = vmatprep.subr.mxu0 0.0
    %446 = vmatpush1.msra.mxu0 %v246
    %447 = vmatprep.subr.mxu0 0.0
    %448 = vmatpush1.msra.mxu0 0.0
    %449 = vmatprep.subr.mxu0 0.0
    %450 = vmatpush1.msra.mxu0 0.0
    %451 = vmatprep.subr.mxu0 0.0
    %452 = vmatpush1.msra.mxu0 0.0
    %453 = vmatprep.subr.mxu0 0.0
    %454 = vmatpush1.msra.mxu0 0.0
    %455 = vmatprep.subr.mxu0 0.0
    %456 = vmatpush1.msra.mxu0 0.0
    %457 = vmatprep.subr.mxu0 0.0
    %458 = vmatpush1.msra.mxu0 0.0
    %459 = vmatprep.subr.mxu0 0.0
    %460 = vmatpush1.msra.mxu0 0.0
    %461 = vmatprep.subr.mxu0 0.0
    %462 = vmatpush1.msra.mxu0 0.0
    %463 = vmatprep.subr.mxu0 0.0
    %464 = vmatpush1.msra.mxu0 0.0
    %465 = vmatprep.subr.mxu0 0.0
    %466 = vmatpush1.msra.mxu0 0.0
    %467 = vmatprep.subr.mxu0 0.0
    %468 = vmatpush1.msra.mxu0 0.0
    %469 = vmatprep.subr.mxu0 0.0
    %470 = vmatpush1.msra.mxu0 0.0
    %471 = vmatprep.subr.mxu0 0.0
    %472 = vmatpush1.msra.mxu0 0.0
    %473 = vmatprep.subr.mxu0 0.0
    %474 = vmatpush1.msra.mxu0 0.0
    %475 = vmatprep.subr.mxu0 0.0
    %476 = vmatpush1.msra.mxu0 0.0
    %477 = vmatprep.subr.mxu0 0.0
    %478 = vmatpush1.msra.mxu0 0.0
    %479 = vmatprep.subr.mxu0 0.0
    %480 = vmatpush1.msra.mxu0 0.0
    %481 = vmatprep.subr.mxu0 0.0
    %482 = vmatpush1.msra.mxu0 0.0
    %483 = vmatprep.subr.mxu0 0.0
    %484 = vmatpush1.msra.mxu0 0.0
    %485 = vmatprep.subr.mxu0 0.0
    %486 = vmatpush1.msra.mxu0 0.0
    %487 = vmatprep.subr.mxu0 0.0
    %488 = vmatpush1.msra.mxu0 0.0
    %489 = vmatprep.subr.mxu0 0.0
    %490 = vmatpush1.msra.mxu0 0.0
    %491 = vmatprep.subr.mxu0 0.0
    %492 = vmatpush1.msra.mxu0 0.0
    %493 = vmatprep.subr.mxu0 0.0
    %494 = vmatpush1.msra.mxu0 0.0
    %495 = vmatprep.subr.mxu0 0.0
    %496 = vmatpush1.msra.mxu0 0.0
    %497 = vmatprep.subr.mxu0 0.0
    %498 = vmatpush1.msra.mxu0 0.0
    %499 = vmatprep.subr.mxu0 0.0
    %500 = vmatpush1.msra.mxu0 0.0
    %501 = vmatprep.subr.mxu0 0.0
    %502 = vmatpush1.msra.mxu0 0.0
    %503 = vmatprep.mubr.f32.mxu0 0.0
    %504 = vmatmul.mubr.f32.gmra.mrb[0].mxu0 %v437
    %v505 = vpop.f32.mrb[0].mxu0
    %v506 = vadd.f32 %v358, %v505
    %v507 = vpop.f32.mrb[0].mxu0
    %508 = vdwg.mxu0
    %v509 = vtanh.pop %v506
    %v510 = vstv %s284
    %vm511 = vcmp.lt.s32.totalorder %v510, %v238
    %v512 = vsel %vm511, 0.0, -1e+30
    %514 = vset.pattern.permute.xlu0 0
    %515 = vperm.xlu0 %514, %v512
    %v516 = vpop.permute.xlu0 %515
    %v518 = vadd.f32 %v509, %v516
    %v519 = vmax.f32 %v283, %v518
    %s520 = sadd.s32 %s284, 1
    %s521 = smul.u32 %s520, 8
    %s522 = scalar_lea.vmem [#allocation2], %s521
    %v523 = vld [vmem:[%s522] sm:$0xff]
    %v525 = vsel %vm225, %v509, 0
    %527 = vmatprep.subr.mxu0 0.0
    %528 = vmatpush1.msra.mxu0 %v247
    %529 = vmatprep.subr.mxu0 0.0
    %530 = vmatpush1.msra.mxu0 %v248
    %531 = vmatprep.subr.mxu0 0.0
    %532 = vmatpush1.msra.mxu0 %v249
    %533 = vmatprep.subr.mxu0 0.0
    %534 = vmatpush1.msra.mxu0 %v250
    %535 = vmatprep.subr.mxu0 0.0
    %536 = vmatpush1.msra.mxu0 0.0
    %537 = vmatprep.subr.mxu0 0.0
    %538 = vmatpush1.msra.mxu0 0.0
    %539 = vmatprep.subr.mxu0 0.0
    %540 = vmatpush1.msra.mxu0 0.0
    %541 = vmatprep.subr.mxu0 0.0
    %542 = vmatpush1.msra.mxu0 0.0
    %543 = vmatprep.subr.mxu0 0.0
    %544 = vmatpush1.msra.mxu0 0.0
    %545 = vmatprep.subr.mxu0 0.0
    %546 = vmatpush1.msra.mxu0 0.0
    %547 = vmatprep.subr.mxu0 0.0
    %548 = vmatpush1.msra.mxu0 0.0
    %549 = vmatprep.subr.mxu0 0.0
    %550 = vmatpush1.msra.mxu0 0.0
    %551 = vmatprep.subr.mxu0 0.0
    %552 = vmatpush1.msra.mxu0 0.0
    %553 = vmatprep.subr.mxu0 0.0
    %554 = vmatpush1.msra.mxu0 0.0
    %555 = vmatprep.subr.mxu0 0.0
    %556 = vmatpush1.msra.mxu0 0.0
    %557 = vmatprep.subr.mxu0 0.0
    %558 = vmatpush1.msra.mxu0 0.0
    %559 = vmatprep.subr.mxu0 0.0
    %560 = vmatpush1.msra.mxu0 0.0
    %561 = vmatprep.subr.mxu0 0.0
    %562 = vmatpush1.msra.mxu0 0.0
    %563 = vmatprep.subr.mxu0 0.0
    %564 = vmatpush1.msra.mxu0 0.0
    %565 = vmatprep.subr.mxu0 0.0
    %566 = vmatpush1.msra.mxu0 0.0
    %567 = vmatprep.subr.mxu0 0.0
    %568 = vmatpush1.msra.mxu0 0.0
    %569 = vmatprep.subr.mxu0 0.0
    %570 = vmatpush1.msra.mxu0 0.0
    %571 = vmatprep.subr.mxu0 0.0
    %572 = vmatpush1.msra.mxu0 0.0
    %573 = vmatprep.subr.mxu0 0.0
    %574 = vmatpush1.msra.mxu0 0.0
    %575 = vmatprep.subr.mxu0 0.0
    %576 = vmatpush1.msra.mxu0 0.0
    %577 = vmatprep.subr.mxu0 0.0
    %578 = vmatpush1.msra.mxu0 0.0
    %579 = vmatprep.subr.mxu0 0.0
    %580 = vmatpush1.msra.mxu0 0.0
    %581 = vmatprep.subr.mxu0 0.0
    %582 = vmatpush1.msra.mxu0 0.0
    %583 = vmatprep.subr.mxu0 0.0
    %584 = vmatpush1.msra.mxu0 0.0
    %585 = vmatprep.subr.mxu0 0.0
    %586 = vmatpush1.msra.mxu0 0.0
    %587 = vmatprep.subr.mxu0 0.0
    %588 = vmatpush1.msra.mxu0 0.0
    %589 = vmatprep.subr.mxu0 0.0
    %590 = vmatpush1.msra.mxu0 0.0
    %591 = vmatprep.mubr.f32.mxu0 0.0
    %592 = vmatmul.mubr.f32.gmra.mrb[0].mxu0 %v525
    %v593 = vpop.f32.mrb[0].mxu0
    %v594 = vadd.f32 %v256, %v593
    %v595 = vpop.f32.mrb[0].mxu0
    %596 = vdwg.mxu0
    %597 = vmatprep.subr.mxu0 0.0
    %598 = vmatpush1.msra.mxu0 %v239
    %599 = vmatprep.subr.mxu0 0.0
    %600 = vmatpush1.msra.mxu0 %v240
    %601 = vmatprep.subr.mxu0 0.0
    %602 = vmatpush1.msra.mxu0 %v241
    %603 = vmatprep.subr.mxu0 0.0
    %604 = vmatpush1.msra.mxu0 %v242
    %605 = vmatprep.subr.mxu0 0.0
    %606 = vmatpush1.msra.mxu0 0.0
    %607 = vmatprep.subr.mxu0 0.0
    %608 = vmatpush1.msra.mxu0 0.0
    %609 = vmatprep.subr.mxu0 0.0
    %610 = vmatpush1.msra.mxu0 0.0
    %611 = vmatprep.subr.mxu0 0.0
    %612 = vmatpush1.msra.mxu0 0.0
    %613 = vmatprep.subr.mxu0 0.0
    %614 = vmatpush1.msra.mxu0 0.0
    %615 = vmatprep.subr.mxu0 0.0
    %616 = vmatpush1.msra.mxu0 0.0
    %617 = vmatprep.subr.mxu0 0.0
    %618 = vmatpush1.msra.mxu0 0.0
    %619 = vmatprep.subr.mxu0 0.0
    %620 = vmatpush1.msra.mxu0 0.0
    %621 = vmatprep.subr.mxu0 0.0
    %622 = vmatpush1.msra.mxu0 0.0
    %623 = vmatprep.subr.mxu0 0.0
    %624 = vmatpush1.msra.mxu0 0.0
    %625 = vmatprep.subr.mxu0 0.0
    %626 = vmatpush1.msra.mxu0 0.0
    %627 = vmatprep.subr.mxu0 0.0
    %628 = vmatpush1.msra.mxu0 0.0
    %629 = vmatprep.subr.mxu0 0.0
    %630 = vmatpush1.msra.mxu0 0.0
    %631 = vmatprep.subr.mxu0 0.0
    %632 = vmatpush1.msra.mxu0 0.0
    %633 = vmatprep.subr.mxu0 0.0
    %634 = vmatpush1.msra.mxu0 0.0
    %635 = vmatprep.subr.mxu0 0.0
    %636 = vmatpush1.msra.mxu0 0.0
    %637 = vmatprep.subr.mxu0 0.0
    %638 = vmatpush1.msra.mxu0 0.0
    %639 = vmatprep.subr.mxu0 0.0
    %640 = vmatpush1.msra.mxu0 0.0
    %641 = vmatprep.subr.mxu0 0.0
    %642 = vmatpush1.msra.mxu0 0.0
    %643 = vmatprep.subr.mxu0 0.0
    %644 = vmatpush1.msra.mxu0 0.0
    %645 = vmatprep.subr.mxu0 0.0
    %646 = vmatpush1.msra.mxu0 0.0
    %647 = vmatprep.subr.mxu0 0.0
    %648 = vmatpush1.msra.mxu0 0.0
    %649 = vmatprep.subr.mxu0 0.0
    %650 = vmatpush1.msra.mxu0 0.0
    %651 = vmatprep.subr.mxu0 0.0
    %652 = vmatpush1.msra.mxu0 0.0
    %653 = vmatprep.subr.mxu0 0.0
    %654 = vmatpush1.msra.mxu0 0.0
    %655 = vmatprep.subr.mxu0 0.0
    %656 = vmatpush1.msra.mxu0 0.0
    %657 = vmatprep.subr.mxu0 0.0
    %658 = vmatpush1.msra.mxu0 0.0
    %659 = vmatprep.subr.mxu0 0.0
    %660 = vmatpush1.msra.mxu0 0.0
    %661 = vmatprep.mubr.f32.mxu0 0.0
    %662 = vmatmul.mubr.f32.gmra.mrb[0].mxu0 %v437
    %v663 = vpop.f32.mrb[0].mxu0
    %v664 = vadd.f32 0.0, %v663
    %v665 = vpop.f32.mrb[0].mxu0
    %666 = vdwg.mxu0
    %v667 = vadd.f32 %v523, %v664
    %v668 = vtanh.pop %v667
    %v670 = vsel %vm225, %v668, 0
    %672 = vmatprep.subr.mxu0 0.0
    %673 = vmatpush1.msra.mxu0 %v243
    %674 = vmatprep.subr.mxu0 0.0
    %675 = vmatpush1.msra.mxu0 %v244
    %676 = vmatprep.subr.mxu0 0.0
    %677 = vmatpush1.msra.mxu0 %v245
    %678 = vmatprep.subr.mxu0 0.0
    %679 = vmatpush1.msra.mxu0 %v246
    %680 = vmatprep.subr.mxu0 0.0
    %681 = vmatpush1.msra.mxu0 0.0
    %682 = vmatprep.subr.mxu0 0.0
    %683 = vmatpush1.msra.mxu0 0.0
    %684 = vmatprep.subr.mxu0 0.0
    %685 = vmatpush1.msra.mxu0 0.0
    %686 = vmatprep.subr.mxu0 0.0
    %687 = vmatpush1.msra.mxu0 0.0
    %688 = vmatprep.subr.mxu0 0.0
    %689 = vmatpush1.msra.mxu0 0.0
    %690 = vmatprep.subr.mxu0 0.0
    %691 = vmatpush1.msra.mxu0 0.0
    %692 = vmatprep.subr.mxu0 0.0
    %693 = vmatpush1.msra.mxu0 0.0
    %694 = vmatprep.subr.mxu0 0.0
    %695 = vmatpush1.msra.mxu0 0.0
    %696 = vmatprep.subr.mxu0 0.0
    %697 = vmatpush1.msra.mxu0 0.0
    %698 = vmatprep.subr.mxu0 0.0
    %699 = vmatpush1.msra.mxu0 0.0
    %700 = vmatprep.subr.mxu0 0.0
    %701 = vmatpush1.msra.mxu0 0.0
    %702 = vmatprep.subr.mxu0 0.0
    %703 = vmatpush1.msra.mxu0 0.0
    %704 = vmatprep.subr.mxu0 0.0
    %705 = vmatpush1.msra.mxu0 0.0
    %706 = vmatprep.subr.mxu0 0.0
    %707 = vmatpush1.msra.mxu0 0.0
    %708 = vmatprep.subr.mxu0 0.0
    %709 = vmatpush1.msra.mxu0 0.0
    %710 = vmatprep.subr.mxu0 0.0
    %711 = vmatpush1.msra.mxu0 0.0
    %712 = vmatprep.subr.mxu0 0.0
    %713 = vmatpush1.msra.mxu0 0.0
    %714 = vmatprep.subr.mxu0 0.0
    %715 = vmatpush1.msra.mxu0 0.0
    %716 = vmatprep.subr.mxu0 0.0
    %717 = vmatpush1.msra.mxu0 0.0
    %718 = vmatprep.subr.mxu0 0.0
    %719 = vmatpush1.msra.mxu0 0.0
    %720 = vmatprep.subr.mxu0 0.0
    %721 = vmatpush1.msra.mxu0 0.0
    %722 = vmatprep.subr.mxu0 0.0
    %723 = vmatpush1.msra.mxu0 0.0
    %724 = vmatprep.subr.mxu0 0.0
    %725 = vmatpush1.msra.mxu0 0.0
    %726 = vmatprep.subr.mxu0 0.0
    %727 = vmatpush1.msra.mxu0 0.0
    %728 = vmatprep.subr.mxu0 0.0
    %729 = vmatpush1.msra.mxu0 0.0
    %730 = vmatprep.subr.mxu0 0.0
    %731 = vmatpush1.msra.mxu0 0.0
    %732 = vmatprep.subr.mxu0 0.0
    %733 = vmatpush1.msra.mxu0 0.0
    %734 = vmatprep.subr.mxu0 0.0
    %735 = vmatpush1.msra.mxu0 0.0
    %736 = vmatprep.mubr.f32.mxu0 0.0
    %737 = vmatmul.mubr.f32.gmra.mrb[0].mxu0 %v670
    %v738 = vpop.f32.mrb[0].mxu0
    %v739 = vadd.f32 %v594, %v738
    %v740 = vpop.f32.mrb[0].mxu0
    %741 = vdwg.mxu0
    %v742 = vtanh.pop %v739
    %v743 = vstv %s520
    %vm744 = vcmp.lt.s32.totalorder %v743, %v238
    %v745 = vsel %vm744, 0.0, -1e+30
    %747 = vset.pattern.permute.xlu0 0
    %748 = vperm.xlu0 %747, %v745
    %v749 = vpop.permute.xlu0 %748
    %v751 = vadd.f32 %v742, %v749
    %v752 = vmax.f32 %v519, %v751
    %s753 = sadd.s32 %s284, 2
    %s754 = smul.u32 %s753, 8
    %s755 = scalar_lea.vmem [#allocation2], %s754
    %v756 = vld [vmem:[%s755] sm:$0xff]
    %v758 = vsel %vm225, %v742, 0
    %760 = vmatprep.subr.mxu0 0.0
    %761 = vmatpush1.msra.mxu0 %v247
    %762 = vmatprep.subr.mxu0 0.0
    %763 = vmatpush1.msra.mxu0 %v248
    %764 = vmatprep.subr.mxu0 0.0
    %765 = vmatpush1.msra.mxu0 %v249
    %766 = vmatprep.subr.mxu0 0.0
    %767 = vmatpush1.msra.mxu0 %v250
    %768 = vmatprep.subr.mxu0 0.0
    %769 = vmatpush1.msra.mxu0 0.0
    %770 = vmatprep.subr.mxu0 0.0
    %771 = vmatpush1.msra.mxu0 0.0
    %772 = vmatprep.subr.mxu0 0.0
    %773 = vmatpush1.msra.mxu0 0.0
    %774 = vmatprep.subr.mxu0 0.0
    %775 = vmatpush1.msra.mxu0 0.0
    %776 = vmatprep.subr.mxu0 0.0
    %777 = vmatpush1.msra.mxu0 0.0
    %778 = vmatprep.subr.mxu0 0.0
    %779 = vmatpush1.msra.mxu0 0.0
    %780 = vmatprep.subr.mxu0 0.0
    %781 = vmatpush1.msra.mxu0 0.0
    %782 = vmatprep.subr.mxu0 0.0
    %783 = vmatpush1.msra.mxu0 0.0
    %784 = vmatprep.subr.mxu0 0.0
    %785 = vmatpush1.msra.mxu0 0.0
    %786 = vmatprep.subr.mxu0 0.0
    %787 = vmatpush1.msra.mxu0 0.0
    %788 = vmatprep.subr.mxu0 0.0
    %789 = vmatpush1.msra.mxu0 0.0
    %790 = vmatprep.subr.mxu0 0.0
    %791 = vmatpush1.msra.mxu0 0.0
    %792 = vmatprep.subr.mxu0 0.0
    %793 = vmatpush1.msra.mxu0 0.0
    %794 = vmatprep.subr.mxu0 0.0
    %795 = vmatpush1.msra.mxu0 0.0
    %796 = vmatprep.subr.mxu0 0.0
    %797 = vmatpush1.msra.mxu0 0.0
    %798 = vmatprep.subr.mxu0 0.0
    %799 = vmatpush1.msra.mxu0 0.0
    %800 = vmatprep.subr.mxu0 0.0
    %801 = vmatpush1.msra.mxu0 0.0
    %802 = vmatprep.subr.mxu0 0.0
    %803 = vmatpush1.msra.mxu0 0.0
    %804 = vmatprep.subr.mxu0 0.0
    %805 = vmatpush1.msra.mxu0 0.0
    %806 = vmatprep.subr.mxu0 0.0
    %807 = vmatpush1.msra.mxu0 0.0
    %808 = vmatprep.subr.mxu0 0.0
    %809 = vmatpush1.msra.mxu0 0.0
    %810 = vmatprep.subr.mxu0 0.0
    %811 = vmatpush1.msra.mxu0 0.0
    %812 = vmatprep.subr.mxu0 0.0
    %813 = vmatpush1.msra.mxu0 0.0
    %814 = vmatprep.subr.mxu0 0.0
    %815 = vmatpush1.msra.mxu0 0.0
    %816 = vmatprep.subr.mxu0 0.0
    %817 = vmatpush1.msra.mxu0 0.0
    %818 = vmatprep.subr.mxu0 0.0
    %819 = vmatpush1.msra.mxu0 0.0
    %820 = vmatprep.subr.mxu0 0.0
    %821 = vmatpush1.msra.mxu0 0.0
    %822 = vmatprep.subr.mxu0 0.0
    %823 = vmatpush1.msra.mxu0 0.0
    %824 = vmatprep.mubr.f32.mxu0 0.0
    %825 = vmatmul.mubr.f32.gmra.mrb[0].mxu0 %v758
    %v826 = vpop.f32.mrb[0].mxu0
    %v827 = vadd.f32 %v256, %v826
    %v828 = vpop.f32.mrb[0].mxu0
    %829 = vdwg.mxu0
    %830 = vmatprep.subr.mxu0 0.0
    %831 = vmatpush1.msra.mxu0 %v239
    %832 = vmatprep.subr.mxu0 0.0
    %833 = vmatpush1.msra.mxu0 %v240
    %834 = vmatprep.subr.mxu0 0.0
    %835 = vmatpush1.msra.mxu0 %v241
    %836 = vmatprep.subr.mxu0 0.0
    %837 = vmatpush1.msra.mxu0 %v242
    %838 = vmatprep.subr.mxu0 0.0
    %839 = vmatpush1.msra.mxu0 0.0
    %840 = vmatprep.subr.mxu0 0.0
    %841 = vmatpush1.msra.mxu0 0.0
    %842 = vmatprep.subr.mxu0 0.0
    %843 = vmatpush1.msra.mxu0 0.0
    %844 = vmatprep.subr.mxu0 0.0
    %845 = vmatpush1.msra.mxu0 0.0
    %846 = vmatprep.subr.mxu0 0.0
    %847 = vmatpush1.msra.mxu0 0.0
    %848 = vmatprep.subr.mxu0 0.0
    %849 = vmatpush1.msra.mxu0 0.0
    %850 = vmatprep.subr.mxu0 0.0
    %851 = vmatpush1.msra.mxu0 0.0
    %852 = vmatprep.subr.mxu0 0.0
    %853 = vmatpush1.msra.mxu0 0.0
    %854 = vmatprep.subr.mxu0 0.0
    %855 = vmatpush1.msra.mxu0 0.0
    %856 = vmatprep.subr.mxu0 0.0
    %857 = vmatpush1.msra.mxu0 0.0
    %858 = vmatprep.subr.mxu0 0.0
    %859 = vmatpush1.msra.mxu0 0.0
    %860 = vmatprep.subr.mxu0 0.0
    %861 = vmatpush1.msra.mxu0 0.0
    %862 = vmatprep.subr.mxu0 0.0
    %863 = vmatpush1.msra.mxu0 0.0
    %864 = vmatprep.subr.mxu0 0.0
    %865 = vmatpush1.msra.mxu0 0.0
    %866 = vmatprep.subr.mxu0 0.0
    %867 = vmatpush1.msra.mxu0 0.0
    %868 = vmatprep.subr.mxu0 0.0
    %869 = vmatpush1.msra.mxu0 0.0
    %870 = vmatprep.subr.mxu0 0.0
    %871 = vmatpush1.msra.mxu0 0.0
    %872 = vmatprep.subr.mxu0 0.0
    %873 = vmatpush1.msra.mxu0 0.0
    %874 = vmatprep.subr.mxu0 0.0
    %875 = vmatpush1.msra.mxu0 0.0
    %876 = vmatprep.subr.mxu0 0.0
    %877 = vmatpush1.msra.mxu0 0.0
    %878 = vmatprep.subr.mxu0 0.0
    %879 = vmatpush1.msra.mxu0 0.0
    %880 = vmatprep.subr.mxu0 0.0
    %881 = vmatpush1.msra.mxu0 0.0
    %882 = vmatprep.subr.mxu0 0.0
    %883 = vmatpush1.msra.mxu0 0.0
    %884 = vmatprep.subr.mxu0 0.0
    %885 = vmatpush1.msra.mxu0 0.0
    %886 = vmatprep.subr.mxu0 0.0
    %887 = vmatpush1.msra.mxu0 0.0
    %888 = vmatprep.subr.mxu0 0.0
    %889 = vmatpush1.msra.mxu0 0.0
    %890 = vmatprep.subr.mxu0 0.0
    %891 = vmatpush1.msra.mxu0 0.0
    %892 = vmatprep.subr.mxu0 0.0
    %893 = vmatpush1.msra.mxu0 0.0
    %894 = vmatprep.mubr.f32.mxu0 0.0
    %895 = vmatmul.mubr.f32.gmra.mrb[0].mxu0 %v670
    %v896 = vpop.f32.mrb[0].mxu0
    %v897 = vadd.f32 0.0, %v896
    %v898 = vpop.f32.mrb[0].mxu0
    %899 = vdwg.mxu0
    %v900 = vadd.f32 %v756, %v897
    %v901 = vtanh.pop %v900
    %v903 = vsel %vm225, %v901, 0
    %905 = vmatprep.subr.mxu0 0.0
    %906 = vmatpush1.msra.mxu0 %v243
    %907 = vmatprep.subr.mxu0 0.0
    %908 = vmatpush1.msra.mxu0 %v244
    %909 = vmatprep.subr.mxu0 0.0
    %910 = vmatpush1.msra.mxu0 %v245
    %911 = vmatprep.subr.mxu0 0.0
    %912 = vmatpush1.msra.mxu0 %v246
    %913 = vmatprep.subr.mxu0 0.0
    %914 = vmatpush1.msra.mxu0 0.0
    %915 = vmatprep.subr.mxu0 0.0
    %916 = vmatpush1.msra.mxu0 0.0
    %917 = vmatprep.subr.mxu0 0.0
    %918 = vmatpush1.msra.mxu0 0.0
    %919 = vmatprep.subr.mxu0 0.0
    %920 = vmatpush1.msra.mxu0 0.0
    %921 = vmatprep.subr.mxu0 0.0
    %922 = vmatpush1.msra.mxu0 0.0
    %923 = vmatprep.subr.mxu0 0.0
    %924 = vmatpush1.msra.mxu0 0.0
    %925 = vmatprep.subr.mxu0 0.0
    %926 = vmatpush1.msra.mxu0 0.0
    %927 = vmatprep.subr.mxu0 0.0
    %928 = vmatpush1.msra.mxu0 0.0
    %929 = vmatprep.subr.mxu0 0.0
    %930 = vmatpush1.msra.mxu0 0.0
    %931 = vmatprep.subr.mxu0 0.0
    %932 = vmatpush1.msra.mxu0 0.0
    %933 = vmatprep.subr.mxu0 0.0
    %934 = vmatpush1.msra.mxu0 0.0
    %935 = vmatprep.subr.mxu0 0.0
    %936 = vmatpush1.msra.mxu0 0.0
    %937 = vmatprep.subr.mxu0 0.0
    %938 = vmatpush1.msra.mxu0 0.0
    %939 = vmatprep.subr.mxu0 0.0
    %940 = vmatpush1.msra.mxu0 0.0
    %941 = vmatprep.subr.mxu0 0.0
    %942 = vmatpush1.msra.mxu0 0.0
    %943 = vmatprep.subr.mxu0 0.0
    %944 = vmatpush1.msra.mxu0 0.0
    %945 = vmatprep.subr.mxu0 0.0
    %946 = vmatpush1.msra.mxu0 0.0
    %947 = vmatprep.subr.mxu0 0.0
    %948 = vmatpush1.msra.mxu0 0.0
    %949 = vmatprep.subr.mxu0 0.0
    %950 = vmatpush1.msra.mxu0 0.0
    %951 = vmatprep.subr.mxu0 0.0
    %952 = vmatpush1.msra.mxu0 0.0
    %953 = vmatprep.subr.mxu0 0.0
    %954 = vmatpush1.msra.mxu0 0.0
    %955 = vmatprep.subr.mxu0 0.0
    %956 = vmatpush1.msra.mxu0 0.0
    %957 = vmatprep.subr.mxu0 0.0
    %958 = vmatpush1.msra.mxu0 0.0
    %959 = vmatprep.subr.mxu0 0.0
    %960 = vmatpush1.msra.mxu0 0.0
    %961 = vmatprep.subr.mxu0 0.0
    %962 = vmatpush1.msra.mxu0 0.0
    %963 = vmatprep.subr.mxu0 0.0
    %964 = vmatpush1.msra.mxu0 0.0
    %965 = vmatprep.subr.mxu0 0.0
    %966 = vmatpush1.msra.mxu0 0.0
    %967 = vmatprep.subr.mxu0 0.0
    %968 = vmatpush1.msra.mxu0 0.0
    %969 = vmatprep.mubr.f32.mxu0 0.0
    %970 = vmatmul.mubr.f32.gmra.mrb[0].mxu0 %v903
    %v971 = vpop.f32.mrb[0].mxu0
    %v972 = vadd.f32 %v827, %v971
    %v973 = vpop.f32.mrb[0].mxu0
    %974 = vdwg.mxu0
    %v975 = vtanh.pop %v972
    %v976 = vstv %s753
    %vm977 = vcmp.lt.s32.totalorder %v976, %v238
    %v978 = vsel %vm977, 0.0, -1e+30
    %980 = vset.pattern.permute.xlu0 0
    %981 = vperm.xlu0 %980, %v978
    %v982 = vpop.permute.xlu0 %981
    %v984 = vadd.f32 %v975, %v982
    %v985 = vmax.f32 %v752, %v984
    %s986 = sadd.s32 %s284, 3
    %s987 = smul.u32 %s986, 8
    %s988 = scalar_lea.vmem [#allocation2], %s987
    %v989 = vld [vmem:[%s988] sm:$0xff]
    %v991 = vsel %vm225, %v975, 0
    %993 = vmatprep.subr.mxu0 0.0
    %994 = vmatpush1.msra.mxu0 %v247
    %995 = vmatprep.subr.mxu0 0.0
    %996 = vmatpush1.msra.mxu0 %v248
    %997 = vmatprep.subr.mxu0 0.0
    %998 = vmatpush1.msra.mxu0 %v249
    %999 = vmatprep.subr.mxu0 0.0
    %1000 = vmatpush1.msra.mxu0 %v250
    %1001 = vmatprep.subr.mxu0 0.0
    %1002 = vmatpush1.msra.mxu0 0.0
    %1003 = vmatprep.subr.mxu0 0.0
    %1004 = vmatpush1.msra.mxu0 0.0
    %1005 = vmatprep.subr.mxu0 0.0
    %1006 = vmatpush1.msra.mxu0 0.0
    %1007 = vmatprep.subr.mxu0 0.0
    %1008 = vmatpush1.msra.mxu0 0.0
    %1009 = vmatprep.subr.mxu0 0.0
    %1010 = vmatpush1.msra.mxu0 0.0
    %1011 = vmatprep.subr.mxu0 0.0
    %1012 = vmatpush1.msra.mxu0 0.0
    %1013 = vmatprep.subr.mxu0 0.0
    %1014 = vmatpush1.msra.mxu0 0.0
    %1015 = vmatprep.subr.mxu0 0.0
    %1016 = vmatpush1.msra.mxu0 0.0
    %1017 = vmatprep.subr.mxu0 0.0
    %1018 = vmatpush1.msra.mxu0 0.0
    %1019 = vmatprep.subr.mxu0 0.0
    %1020 = vmatpush1.msra.mxu0 0.0
    %1021 = vmatprep.subr.mxu0 0.0
    %1022 = vmatpush1.msra.mxu0 0.0
    %1023 = vmatprep.subr.mxu0 0.0
    %1024 = vmatpush1.msra.mxu0 0.0
    %1025 = vmatprep.subr.mxu0 0.0
    %1026 = vmatpush1.msra.mxu0 0.0
    %1027 = vmatprep.subr.mxu0 0.0
    %1028 = vmatpush1.msra.mxu0 0.0
    %1029 = vmatprep.subr.mxu0 0.0
    %1030 = vmatpush1.msra.mxu0 0.0
    %1031 = vmatprep.subr.mxu0 0.0
    %1032 = vmatpush1.msra.mxu0 0.0
    %1033 = vmatprep.subr.mxu0 0.0
    %1034 = vmatpush1.msra.mxu0 0.0
    %1035 = vmatprep.subr.mxu0 0.0
    %1036 = vmatpush1.msra.mxu0 0.0
    %1037 = vmatprep.subr.mxu0 0.0
    %1038 = vmatpush1.msra.mxu0 0.0
    %1039 = vmatprep.subr.mxu0 0.0
    %1040 = vmatpush1.msra.mxu0 0.0
    %1041 = vmatprep.subr.mxu0 0.0
    %1042 = vmatpush1.msra.mxu0 0.0
    %1043 = vmatprep.subr.mxu0 0.0
    %1044 = vmatpush1.msra.mxu0 0.0
    %1045 = vmatprep.subr.mxu0 0.0
    %1046 = vmatpush1.msra.mxu0 0.0
    %1047 = vmatprep.subr.mxu0 0.0
    %1048 = vmatpush1.msra.mxu0 0.0
    %1049 = vmatprep.subr.mxu0 0.0
    %1050 = vmatpush1.msra.mxu0 0.0
    %1051 = vmatprep.subr.mxu0 0.0
    %1052 = vmatpush1.msra.mxu0 0.0
    %1053 = vmatprep.subr.mxu0 0.0
    %1054 = vmatpush1.msra.mxu0 0.0
    %1055 = vmatprep.subr.mxu0 0.0
    %1056 = vmatpush1.msra.mxu0 0.0
    %1057 = vmatprep.mubr.f32.mxu0 0.0
    %1058 = vmatmul.mubr.f32.gmra.mrb[0].mxu0 %v991
    %v1059 = vpop.f32.mrb[0].mxu0
    %v1060 = vadd.f32 %v256, %v1059
    %v1061 = vpop.f32.mrb[0].mxu0
    %1062 = vdwg.mxu0
    %1063 = vmatprep.subr.mxu0 0.0
    %1064 = vmatpush1.msra.mxu0 %v239
    %1065 = vmatprep.subr.mxu0 0.0
    %1066 = vmatpush1.msra.mxu0 %v240
    %1067 = vmatprep.subr.mxu0 0.0
    %1068 = vmatpush1.msra.mxu0 %v241
    %1069 = vmatprep.subr.mxu0 0.0
    %1070 = vmatpush1.msra.mxu0 %v242
    %1071 = vmatprep.subr.mxu0 0.0
    %1072 = vmatpush1.msra.mxu0 0.0
    %1073 = vmatprep.subr.mxu0 0.0
    %1074 = vmatpush1.msra.mxu0 0.0
    %1075 = vmatprep.subr.mxu0 0.0
    %1076 = vmatpush1.msra.mxu0 0.0
    %1077 = vmatprep.subr.mxu0 0.0
    %1078 = vmatpush1.msra.mxu0 0.0
    %1079 = vmatprep.subr.mxu0 0.0
    %1080 = vmatpush1.msra.mxu0 0.0
    %1081 = vmatprep.subr.mxu0 0.0
    %1082 = vmatpush1.msra.mxu0 0.0
    %1083 = vmatprep.subr.mxu0 0.0
    %1084 = vmatpush1.msra.mxu0 0.0
    %1085 = vmatprep.subr.mxu0 0.0
    %1086 = vmatpush1.msra.mxu0 0.0
    %1087 = vmatprep.subr.mxu0 0.0
    %1088 = vmatpush1.msra.mxu0 0.0
    %1089 = vmatprep.subr.mxu0 0.0
    %1090 = vmatpush1.msra.mxu0 0.0
    %1091 = vmatprep.subr.mxu0 0.0
    %1092 = vmatpush1.msra.mxu0 0.0
    %1093 = vmatprep.subr.mxu0 0.0
    %1094 = vmatpush1.msra.mxu0 0.0
    %1095 = vmatprep.subr.mxu0 0.0
    %1096 = vmatpush1.msra.mxu0 0.0
    %1097 = vmatprep.subr.mxu0 0.0
    %1098 = vmatpush1.msra.mxu0 0.0
    %1099 = vmatprep.subr.mxu0 0.0
    %1100 = vmatpush1.msra.mxu0 0.0
    %1101 = vmatprep.subr.mxu0 0.0
    %1102 = vmatpush1.msra.mxu0 0.0
    %1103 = vmatprep.subr.mxu0 0.0
    %1104 = vmatpush1.msra.mxu0 0.0
    %1105 = vmatprep.subr.mxu0 0.0
    %1106 = vmatpush1.msra.mxu0 0.0
    %1107 = vmatprep.subr.mxu0 0.0
    %1108 = vmatpush1.msra.mxu0 0.0
    %1109 = vmatprep.subr.mxu0 0.0
    %1110 = vmatpush1.msra.mxu0 0.0
    %1111 = vmatprep.subr.mxu0 0.0
    %1112 = vmatpush1.msra.mxu0 0.0
    %1113 = vmatprep.subr.mxu0 0.0
    %1114 = vmatpush1.msra.mxu0 0.0
    %1115 = vmatprep.subr.mxu0 0.0
    %1116 = vmatpush1.msra.mxu0 0.0
    %1117 = vmatprep.subr.mxu0 0.0
    %1118 = vmatpush1.msra.mxu0 0.0
    %1119 = vmatprep.subr.mxu0 0.0
    %1120 = vmatpush1.msra.mxu0 0.0
    %1121 = vmatprep.subr.mxu0 0.0
    %1122 = vmatpush1.msra.mxu0 0.0
    %1123 = vmatprep.subr.mxu0 0.0
    %1124 = vmatpush1.msra.mxu0 0.0
    %1125 = vmatprep.subr.mxu0 0.0
    %1126 = vmatpush1.msra.mxu0 0.0
    %1127 = vmatprep.mubr.f32.mxu0 0.0
    %1128 = vmatmul.mubr.f32.gmra.mrb[0].mxu0 %v903
    %v1129 = vpop.f32.mrb[0].mxu0
    %v1130 = vadd.f32 0.0, %v1129
    %v1131 = vpop.f32.mrb[0].mxu0
    %1132 = vdwg.mxu0
    %v1133 = vadd.f32 %v989, %v1130
    %v1134 = vtanh.pop %v1133
    %v1136 = vsel %vm225, %v1134, 0
    %1138 = vmatprep.subr.mxu0 0.0
    %1139 = vmatpush1.msra.mxu0 %v243
    %1140 = vmatprep.subr.mxu0 0.0
    %1141 = vmatpush1.msra.mxu0 %v244
    %1142 = vmatprep.subr.mxu0 0.0
    %1143 = vmatpush1.msra.mxu0 %v245
    %1144 = vmatprep.subr.mxu0 0.0
    %1145 = vmatpush1.msra.mxu0 %v246
    %1146 = vmatprep.subr.mxu0 0.0
    %1147 = vmatpush1.msra.mxu0 0.0
    %1148 = vmatprep.subr.mxu0 0.0
    %1149 = vmatpush1.msra.mxu0 0.0
    %1150 = vmatprep.subr.mxu0 0.0
    %1151 = vmatpush1.msra.mxu0 0.0
    %1152 = vmatprep.subr.mxu0 0.0
    %1153 = vmatpush1.msra.mxu0 0.0
    %1154 = vmatprep.subr.mxu0 0.0
    %1155 = vmatpush1.msra.mxu0 0.0
    %1156 = vmatprep.subr.mxu0 0.0
    %1157 = vmatpush1.msra.mxu0 0.0
    %1158 = vmatprep.subr.mxu0 0.0
    %1159 = vmatpush1.msra.mxu0 0.0
    %1160 = vmatprep.subr.mxu0 0.0
    %1161 = vmatpush1.msra.mxu0 0.0
    %1162 = vmatprep.subr.mxu0 0.0
    %1163 = vmatpush1.msra.mxu0 0.0
    %1164 = vmatprep.subr.mxu0 0.0
    %1165 = vmatpush1.msra.mxu0 0.0
    %1166 = vmatprep.subr.mxu0 0.0
    %1167 = vmatpush1.msra.mxu0 0.0
    %1168 = vmatprep.subr.mxu0 0.0
    %1169 = vmatpush1.msra.mxu0 0.0
    %1170 = vmatprep.subr.mxu0 0.0
    %1171 = vmatpush1.msra.mxu0 0.0
    %1172 = vmatprep.subr.mxu0 0.0
    %1173 = vmatpush1.msra.mxu0 0.0
    %1174 = vmatprep.subr.mxu0 0.0
    %1175 = vmatpush1.msra.mxu0 0.0
    %1176 = vmatprep.subr.mxu0 0.0
    %1177 = vmatpush1.msra.mxu0 0.0
    %1178 = vmatprep.subr.mxu0 0.0
    %1179 = vmatpush1.msra.mxu0 0.0
    %1180 = vmatprep.subr.mxu0 0.0
    %1181 = vmatpush1.msra.mxu0 0.0
    %1182 = vmatprep.subr.mxu0 0.0
    %1183 = vmatpush1.msra.mxu0 0.0
    %1184 = vmatprep.subr.mxu0 0.0
    %1185 = vmatpush1.msra.mxu0 0.0
    %1186 = vmatprep.subr.mxu0 0.0
    %1187 = vmatpush1.msra.mxu0 0.0
    %1188 = vmatprep.subr.mxu0 0.0
    %1189 = vmatpush1.msra.mxu0 0.0
    %1190 = vmatprep.subr.mxu0 0.0
    %1191 = vmatpush1.msra.mxu0 0.0
    %1192 = vmatprep.subr.mxu0 0.0
    %1193 = vmatpush1.msra.mxu0 0.0
    %1194 = vmatprep.subr.mxu0 0.0
    %1195 = vmatpush1.msra.mxu0 0.0
    %1196 = vmatprep.subr.mxu0 0.0
    %1197 = vmatpush1.msra.mxu0 0.0
    %1198 = vmatprep.subr.mxu0 0.0
    %1199 = vmatpush1.msra.mxu0 0.0
    %1200 = vmatprep.subr.mxu0 0.0
    %1201 = vmatpush1.msra.mxu0 0.0
    %1202 = vmatprep.mubr.f32.mxu0 0.0
    %1203 = vmatmul.mubr.f32.gmra.mrb[0].mxu0 %v1136
    %v1204 = vpop.f32.mrb[0].mxu0
    %v1205 = vadd.f32 %v1060, %v1204
    %v1206 = vpop.f32.mrb[0].mxu0
    %1207 = vdwg.mxu0
    %v1208 = vtanh.pop %v1205
    %v1209 = vstv %s986
    %vm1210 = vcmp.lt.s32.totalorder %v1209, %v238
    %v1211 = vsel %vm1210, 0.0, -1e+30
    %1213 = vset.pattern.permute.xlu0 0
    %1214 = vperm.xlu0 %1213, %v1211
    %v1215 = vpop.permute.xlu0 %1214
    %v1217 = vadd.f32 %v1208, %v1215
    %v1218 = vmax.f32 %v985, %v1217
    %1219 = vst.msk [vmem:[#allocation3] sm:$0xff] %vm225, %v1134
    %1220 = vst.msk [vmem:[#allocation4] sm:$0xff] %vm225, %v1208
    %1221 = vst.msk [vmem:[#allocation5] sm:$0xff] %vm225, %v1218
  $region50: #{text_classifier_forward.1} parent=0 // loop_footer
    %s278 = sadd.s32 %s276, 1
  $region51: #{text_classifier_forward.1} parent=0 // loop_footer_branch
    %275 = sbr.rel target = $region47
  $region52: #{text_classifier_forward.1} parent=0 // loop_exit
    _
  %v1222 = vld [vmem:[#allocation5] sm:$0xff]
  %v1223 = vld [vmem:[%s10] sm:$0x1]
  %v1225 = vlaneseq
  %v1226 = vshrl.u32 %v1225, 7
  %v1227 = vsub.s32 0, %v1226
  %v1228 = vrot.slane %v1223, %v1227
  %v1230 = vmul.f32 %v1222, %v1228
  %v1231 = vsel %vm225, %v1230, 0.0
  %1232 = vadd.xlane.f32.xlu0 %v1231
  %v1233 = vpop.xlane.xlu0 %1232
  %v1234 = vld [vmem:[#allocation8] sm:$0x1]
  %v1236 = vlaneseq
  %v1237 = vshrl.u32 %v1236, 7
  %v1238 = vsub.s32 0, %v1237
  %v1239 = vrot.slane %v1234, %v1238
  %v1241 = vadd.f32 %v1233, %v1239
  %v1242 = vxor.u32 %v1241, 2147483648
  %v1243 = vmul.f32 %v1242, 1.442695
  %v1244 = vpow.pop %v1243
  %v1245 = vadd.f32 %v1244, 1.0
  %v1246 = vrcp.pop %v1245
  %v1247 = vmul.f32 1.0, %v1246
  %vm1248 = vcmask 7168
  %1249 = vst.msk [vmem:[%s12] sm:$0xff] %vm1248, %v1247
  // Predicated region
  $region53: #{text_classifier_forward.1} parent=0 // pred_check
    _
  $region54: #{text_classifier_forward.1} parent=0 // pred_check_branch
    %1251 = sbr.rel (0) target = $region56
  $region55: #{text_classifier_forward.1} parent=0 // pred_region
    _
  $region56: #{text_classifier_forward.1} parent=0 // pred_fallthru
    _
  // Predicated region
  $region57: #{text_classifier_forward.1} parent=0 // pred_check
    _
  $region58: #{text_classifier_forward.1} parent=0 // pred_check_branch
    %1253 = sbr.rel (0) target = $region60
  $region59: #{text_classifier_forward.1} parent=0 // pred_region
    _
  $region60: #{text_classifier_forward.1} parent=0 // pred_fallthru
    _

</llo_original>
